<compile_context>
chip_gen: v7x
topology: tpu7x:2x2x1
jax: 0.10.0
libtpu: 0.0.40
codegen_flags: <defaults>
</compile_context>

<pallas_src>
import math

import numpy as np
import jax
import jax.numpy as jnp
from jax.experimental import pallas as pl
from jax.experimental.pallas import tpu as pltpu


def _fused_sem_gcn_kernel(x_ref, wcat_ref, adjd_ref, adjo_ref,
                          gamma_ref, beta_ref, o_ref):
    """All L layers of SemGraphConv -> BatchNorm1d (train stats) -> ReLU, fused.

    x_ref    : (N, D)      activation slab, N = B*J
    wcat_ref : (L, D, 2D)  per-layer [W0 | W1]
    adjd_ref : (L, N, D)   per-layer diag(adj) broadcast over batch & channels
    adjo_ref : (L, N, N)   per-layer block-diagonal (over batch) off-diag adjacency
    gamma_ref: (L, 1, D)   BatchNorm weight
    beta_ref : (L, 1, D)   BatchNorm bias
    """
    L = wcat_ref.shape[0]
    N, D = x_ref.shape

    x = x_ref[...]                                   # (N, D) stays in vregs/VMEM
    for l in range(L):                               # static unroll over layers
        # one wide MXU matmul for both weight branches
        h = jnp.dot(x, wcat_ref[l], preferred_element_type=jnp.float32)   # (N, 2D)
        h0 = h[:, :D]
        h1 = h[:, D:]

        # SemGraphConv: diag term is elementwise (VPU), off-diag term is one matmul.
        o = adjd_ref[l] * h0 + jnp.dot(adjo_ref[l], h1,
                                       preferred_element_type=jnp.float32)  # (N, D)

        # BatchNorm1d, training mode: biased batch stats over all N rows, per channel.
        mean = jnp.mean(o, axis=0, keepdims=True)                       # (1, D)
        var = jnp.mean(o * o, axis=0, keepdims=True) - mean * mean      # (1, D)
        inv = jax.lax.rsqrt(var + 1e-5)

        y = (o - mean) * inv * gamma_ref[l] + beta_ref[l]
        x = jnp.maximum(y, 0.0)                                         # ReLU

    o_ref[...] = x                                   # single contiguous store


def simple_sem_gcn(x, wcat, adj_diag, adj_off_block, gamma, beta):
    """x: (B, J, D). Stacked params carry a leading (L, ...) layer axis."""
    B, J, D = x.shape
    N = B * J
    out2d = pl.pallas_call(
        _fused_sem_gcn_kernel,
        out_shape=jax.ShapeDtypeStruct((N, D), jnp.float32),
        in_specs=[pl.BlockSpec(memory_space=pltpu.MemorySpace.VMEM)] * 6,
        out_specs=pl.BlockSpec(memory_space=pltpu.MemorySpace.VMEM),
    )(x.reshape(N, D), wcat, adj_diag, adj_off_block, gamma, beta)
    return out2d.reshape(B, J, D)


if __name__ == "__main__":
    B, J, D = 2, 16, 32          # batch, joints (graph nodes), feature dim
    L = 4                        # num_layers
    N = B * J

    # Deterministic adjacency: chain skeleton + self-loops (static buffer, like `adj`).
    adj_np = np.eye(J, dtype=np.float32)
    for i in range(J - 1):
        adj_np[i, i + 1] = 1.0
        adj_np[i + 1, i] = 1.0
    mask_np = adj_np > 0
    rows, cols = np.nonzero(mask_np)   # row-major order == torch `adj[self.m] = self.e`
    nnz = rows.shape[0]
    eye_j = np.eye(J, dtype=np.float32)

    # Deterministic parameter init mirroring the module's __init__ shapes, then
    # preprocess per-layer params into the fused-kernel layout.
    key = jax.random.PRNGKey(0)
    wcats, adjds, adjos, gammas, betas = [], [], [], [], []
    for _ in range(L):
        key, kw = jax.random.split(key)
        a = 1.414 * math.sqrt(6.0 / (D + D))               # xavier_uniform-style bound
        W = jax.random.uniform(kw, (2, D, D), jnp.float32, -a, a)
        e = jnp.ones((nnz,), jnp.float32)                  # nn.init.constant_(self.e, 1)

        # Parameter preprocessing (glue): scatter learnable `e` into masked positions,
        # -9e15 elsewhere, row-softmax (torch F.softmax(adj, dim=1)).
        logits = jnp.full((J, J), -9e15, dtype=jnp.float32).at[rows, cols].set(e)
        adj_soft = jax.nn.softmax(logits, axis=1)          # (J, J)

        diag = jnp.diagonal(adj_soft)                      # (J,)  == adj * eye
        adj_off = adj_soft * (1.0 - eye_j)                 # (J, J) == adj * (1 - eye)

        # diag broadcast over batch rows and channels -> (N, D)
        adjds.append(jnp.broadcast_to(jnp.tile(diag, B)[:, None], (N, D)))
        # block-diagonal (over batch) off-diag adjacency -> (N, N)
        adjos.append(jnp.kron(jnp.eye(B, dtype=jnp.float32), adj_off))
        # concat weight branches -> one wide matmul per layer
        wcats.append(jnp.concatenate([W[0], W[1]], axis=1))          # (D, 2D)
        gammas.append(jnp.ones((1, D), jnp.float32))                 # BN weight
        betas.append(jnp.zeros((1, D), jnp.float32))                 # BN bias
        # NOTE: SemGraphConv bias is intentionally dropped — it is exactly cancelled
        # by the train-mode BatchNorm mean subtraction, so the output is unchanged.

    wcat = jnp.stack(wcats)              # (L, D, 2D)
    adj_diag = jnp.stack(adjds)          # (L, N, D)
    adj_off_block = jnp.stack(adjos)     # (L, N, N)
    gamma = jnp.stack(gammas)            # (L, 1, D)
    beta = jnp.stack(betas)              # (L, 1, D)

    key, kx = jax.random.split(key)
    x = jax.random.normal(kx, (B, J, D), jnp.float32)

    fwd = jax.jit(simple_sem_gcn)
    out = fwd(x, wcat, adj_diag, adj_off_block, gamma, beta)
    jax.block_until_ready(out)
    assert out.shape == (B, J, D)
    assert bool(jnp.all(jnp.isfinite(out)))
    print("KERNEL_OK")
</pallas_src>

<mosaic_0001>
module attributes {stable_mosaic.version = 11 : i64} {
  func.func @_fused_sem_gcn_kernel(%arg0: memref<32x32xf32, #tpu.memory_space<vmem>>, %arg1: memref<4x32x64xf32, #tpu.memory_space<vmem>>, %arg2: memref<4x32x32xf32, #tpu.memory_space<vmem>>, %arg3: memref<4x32x32xf32, #tpu.memory_space<vmem>>, %arg4: memref<4x1x32xf32, #tpu.memory_space<vmem>>, %arg5: memref<4x1x32xf32, #tpu.memory_space<vmem>>, %arg6: memref<32x32xf32, #tpu.memory_space<vmem>>) attributes {dimension_semantics = [], scalar_prefetch = 0 : i64, scratch_operands = 0 : i64, tpu.core_type = #tpu.core_type<tc>} {
    %c0 = arith.constant 0 : index
    %c0_0 = arith.constant 0 : index
    %0 = vector.load %arg0[%c0, %c0_0] : memref<32x32xf32, #tpu.memory_space<vmem>>, vector<32x32xf32>
    %c0_1 = arith.constant 0 : index
    %c0_2 = arith.constant 0 : index
    %c0_3 = arith.constant 0 : index
    %1 = vector.load %arg1[%c0_1, %c0_2, %c0_3] : memref<4x32x64xf32, #tpu.memory_space<vmem>>, vector<1x32x64xf32>
    %2 = vector.shape_cast %1 : vector<1x32x64xf32> to vector<32x64xf32>
    %cst = arith.constant dense<0.000000e+00> : vector<32x64xf32>
    %3 = tpu.matmul %0, %2, %cst {dimension_numbers = #tpu.dot_dimension_numbers<[1], [0], [0], [1], [0, 0, 1, 1], [], []>} : vector<32x32xf32>, vector<32x64xf32>, vector<32x64xf32> -> vector<32x64xf32>
    %4 = vector.extract_strided_slice %3 {offsets = [0, 0], sizes = [32, 32], strides = [1, 1]} : vector<32x64xf32> to vector<32x32xf32>
    %5 = vector.extract_strided_slice %3 {offsets = [0, 32], sizes = [32, 32], strides = [1, 1]} : vector<32x64xf32> to vector<32x32xf32>
    %c0_4 = arith.constant 0 : index
    %c0_5 = arith.constant 0 : index
    %c0_6 = arith.constant 0 : index
    %6 = vector.load %arg2[%c0_4, %c0_5, %c0_6] : memref<4x32x32xf32, #tpu.memory_space<vmem>>, vector<1x32x32xf32>
    %7 = vector.shape_cast %6 : vector<1x32x32xf32> to vector<32x32xf32>
    %8 = arith.mulf %7, %4 : vector<32x32xf32>
    %c0_7 = arith.constant 0 : index
    %c0_8 = arith.constant 0 : index
    %c0_9 = arith.constant 0 : index
    %9 = vector.load %arg3[%c0_7, %c0_8, %c0_9] : memref<4x32x32xf32, #tpu.memory_space<vmem>>, vector<1x32x32xf32>
    %10 = vector.shape_cast %9 : vector<1x32x32xf32> to vector<32x32xf32>
    %cst_10 = arith.constant dense<0.000000e+00> : vector<32x32xf32>
    %11 = tpu.matmul %10, %5, %cst_10 {dimension_numbers = #tpu.dot_dimension_numbers<[1], [0], [0], [1], [0, 0, 1, 1], [], []>} : vector<32x32xf32>, vector<32x32xf32>, vector<32x32xf32> -> vector<32x32xf32>
    %12 = arith.addf %8, %11 : vector<32x32xf32>
    %cst_11 = arith.constant dense<0.000000e+00> : vector<32xf32>
    %13 = vector.multi_reduction <add>, %12, %cst_11 [0] : vector<32x32xf32> to vector<32xf32>
    %14 = vector.shape_cast %13 : vector<32xf32> to vector<1x32xf32>
    %cst_12 = arith.constant 3.200000e+01 : f32
    %15 = vector.broadcast %cst_12 : f32 to vector<1x32xf32>
    %16 = arith.divf %14, %15 : vector<1x32xf32>
    %17 = arith.mulf %12, %12 : vector<32x32xf32>
    %cst_13 = arith.constant dense<0.000000e+00> : vector<32xf32>
    %18 = vector.multi_reduction <add>, %17, %cst_13 [0] : vector<32x32xf32> to vector<32xf32>
    %19 = vector.shape_cast %18 : vector<32xf32> to vector<1x32xf32>
    %cst_14 = arith.constant 3.200000e+01 : f32
    %20 = vector.broadcast %cst_14 : f32 to vector<1x32xf32>
    %21 = arith.divf %19, %20 : vector<1x32xf32>
    %22 = arith.mulf %16, %16 : vector<1x32xf32>
    %23 = arith.subf %21, %22 : vector<1x32xf32>
    %cst_15 = arith.constant 9.99999974E-6 : f32
    %24 = vector.broadcast %cst_15 : f32 to vector<1x32xf32>
    %25 = arith.addf %23, %24 : vector<1x32xf32>
    %26 = math.rsqrt %25 : vector<1x32xf32>
    %27 = vector.broadcast %16 : vector<1x32xf32> to vector<32x32xf32>
    %28 = arith.subf %12, %27 : vector<32x32xf32>
    %29 = vector.broadcast %26 : vector<1x32xf32> to vector<32x32xf32>
    %30 = arith.mulf %28, %29 : vector<32x32xf32>
    %c0_16 = arith.constant 0 : index
    %c0_17 = arith.constant 0 : index
    %c0_18 = arith.constant 0 : index
    %31 = vector.load %arg4[%c0_16, %c0_17, %c0_18] : memref<4x1x32xf32, #tpu.memory_space<vmem>>, vector<1x1x32xf32>
    %32 = vector.shape_cast %31 : vector<1x1x32xf32> to vector<1x32xf32>
    %33 = vector.broadcast %32 : vector<1x32xf32> to vector<32x32xf32>
    %34 = arith.mulf %30, %33 : vector<32x32xf32>
    %c0_19 = arith.constant 0 : index
    %c0_20 = arith.constant 0 : index
    %c0_21 = arith.constant 0 : index
    %35 = vector.load %arg5[%c0_19, %c0_20, %c0_21] : memref<4x1x32xf32, #tpu.memory_space<vmem>>, vector<1x1x32xf32>
    %36 = vector.shape_cast %35 : vector<1x1x32xf32> to vector<1x32xf32>
    %37 = vector.broadcast %36 : vector<1x32xf32> to vector<32x32xf32>
    %38 = arith.addf %34, %37 : vector<32x32xf32>
    %cst_22 = arith.constant 0.000000e+00 : f32
    %39 = vector.broadcast %cst_22 : f32 to vector<32x32xf32>
    %40 = arith.maximumf %38, %39 : vector<32x32xf32>
    %c1 = arith.constant 1 : index
    %c0_23 = arith.constant 0 : index
    %c0_24 = arith.constant 0 : index
    %41 = vector.load %arg1[%c1, %c0_23, %c0_24] : memref<4x32x64xf32, #tpu.memory_space<vmem>>, vector<1x32x64xf32>
    %42 = vector.shape_cast %41 : vector<1x32x64xf32> to vector<32x64xf32>
    %cst_25 = arith.constant dense<0.000000e+00> : vector<32x64xf32>
    %43 = tpu.matmul %40, %42, %cst_25 {dimension_numbers = #tpu.dot_dimension_numbers<[1], [0], [0], [1], [0, 0, 1, 1], [], []>} : vector<32x32xf32>, vector<32x64xf32>, vector<32x64xf32> -> vector<32x64xf32>
    %44 = vector.extract_strided_slice %43 {offsets = [0, 0], sizes = [32, 32], strides = [1, 1]} : vector<32x64xf32> to vector<32x32xf32>
    %45 = vector.extract_strided_slice %43 {offsets = [0, 32], sizes = [32, 32], strides = [1, 1]} : vector<32x64xf32> to vector<32x32xf32>
    %c1_26 = arith.constant 1 : index
    %c0_27 = arith.constant 0 : index
    %c0_28 = arith.constant 0 : index
    %46 = vector.load %arg2[%c1_26, %c0_27, %c0_28] : memref<4x32x32xf32, #tpu.memory_space<vmem>>, vector<1x32x32xf32>
    %47 = vector.shape_cast %46 : vector<1x32x32xf32> to vector<32x32xf32>
    %48 = arith.mulf %47, %44 : vector<32x32xf32>
    %c1_29 = arith.constant 1 : index
    %c0_30 = arith.constant 0 : index
    %c0_31 = arith.constant 0 : index
    %49 = vector.load %arg3[%c1_29, %c0_30, %c0_31] : memref<4x32x32xf32, #tpu.memory_space<vmem>>, vector<1x32x32xf32>
    %50 = vector.shape_cast %49 : vector<1x32x32xf32> to vector<32x32xf32>
    %cst_32 = arith.constant dense<0.000000e+00> : vector<32x32xf32>
    %51 = tpu.matmul %50, %45, %cst_32 {dimension_numbers = #tpu.dot_dimension_numbers<[1], [0], [0], [1], [0, 0, 1, 1], [], []>} : vector<32x32xf32>, vector<32x32xf32>, vector<32x32xf32> -> vector<32x32xf32>
    %52 = arith.addf %48, %51 : vector<32x32xf32>
    %cst_33 = arith.constant dense<0.000000e+00> : vector<32xf32>
    %53 = vector.multi_reduction <add>, %52, %cst_33 [0] : vector<32x32xf32> to vector<32xf32>
    %54 = vector.shape_cast %53 : vector<32xf32> to vector<1x32xf32>
    %cst_34 = arith.constant 3.200000e+01 : f32
    %55 = vector.broadcast %cst_34 : f32 to vector<1x32xf32>
    %56 = arith.divf %54, %55 : vector<1x32xf32>
    %57 = arith.mulf %52, %52 : vector<32x32xf32>
    %cst_35 = arith.constant dense<0.000000e+00> : vector<32xf32>
    %58 = vector.multi_reduction <add>, %57, %cst_35 [0] : vector<32x32xf32> to vector<32xf32>
    %59 = vector.shape_cast %58 : vector<32xf32> to vector<1x32xf32>
    %cst_36 = arith.constant 3.200000e+01 : f32
    %60 = vector.broadcast %cst_36 : f32 to vector<1x32xf32>
    %61 = arith.divf %59, %60 : vector<1x32xf32>
    %62 = arith.mulf %56, %56 : vector<1x32xf32>
    %63 = arith.subf %61, %62 : vector<1x32xf32>
    %cst_37 = arith.constant 9.99999974E-6 : f32
    %64 = vector.broadcast %cst_37 : f32 to vector<1x32xf32>
    %65 = arith.addf %63, %64 : vector<1x32xf32>
    %66 = math.rsqrt %65 : vector<1x32xf32>
    %67 = vector.broadcast %56 : vector<1x32xf32> to vector<32x32xf32>
    %68 = arith.subf %52, %67 : vector<32x32xf32>
    %69 = vector.broadcast %66 : vector<1x32xf32> to vector<32x32xf32>
    %70 = arith.mulf %68, %69 : vector<32x32xf32>
    %c1_38 = arith.constant 1 : index
    %c0_39 = arith.constant 0 : index
    %c0_40 = arith.constant 0 : index
    %71 = vector.load %arg4[%c1_38, %c0_39, %c0_40] : memref<4x1x32xf32, #tpu.memory_space<vmem>>, vector<1x1x32xf32>
    %72 = vector.shape_cast %71 : vector<1x1x32xf32> to vector<1x32xf32>
    %73 = vector.broadcast %72 : vector<1x32xf32> to vector<32x32xf32>
    %74 = arith.mulf %70, %73 : vector<32x32xf32>
    %c1_41 = arith.constant 1 : index
    %c0_42 = arith.constant 0 : index
    %c0_43 = arith.constant 0 : index
    %75 = vector.load %arg5[%c1_41, %c0_42, %c0_43] : memref<4x1x32xf32, #tpu.memory_space<vmem>>, vector<1x1x32xf32>
    %76 = vector.shape_cast %75 : vector<1x1x32xf32> to vector<1x32xf32>
    %77 = vector.broadcast %76 : vector<1x32xf32> to vector<32x32xf32>
    %78 = arith.addf %74, %77 : vector<32x32xf32>
    %cst_44 = arith.constant 0.000000e+00 : f32
    %79 = vector.broadcast %cst_44 : f32 to vector<32x32xf32>
    %80 = arith.maximumf %78, %79 : vector<32x32xf32>
    %c2 = arith.constant 2 : index
    %c0_45 = arith.constant 0 : index
    %c0_46 = arith.constant 0 : index
    %81 = vector.load %arg1[%c2, %c0_45, %c0_46] : memref<4x32x64xf32, #tpu.memory_space<vmem>>, vector<1x32x64xf32>
    %82 = vector.shape_cast %81 : vector<1x32x64xf32> to vector<32x64xf32>
    %cst_47 = arith.constant dense<0.000000e+00> : vector<32x64xf32>
    %83 = tpu.matmul %80, %82, %cst_47 {dimension_numbers = #tpu.dot_dimension_numbers<[1], [0], [0], [1], [0, 0, 1, 1], [], []>} : vector<32x32xf32>, vector<32x64xf32>, vector<32x64xf32> -> vector<32x64xf32>
    %84 = vector.extract_strided_slice %83 {offsets = [0, 0], sizes = [32, 32], strides = [1, 1]} : vector<32x64xf32> to vector<32x32xf32>
    %85 = vector.extract_strided_slice %83 {offsets = [0, 32], sizes = [32, 32], strides = [1, 1]} : vector<32x64xf32> to vector<32x32xf32>
    %c2_48 = arith.constant 2 : index
    %c0_49 = arith.constant 0 : index
    %c0_50 = arith.constant 0 : index
    %86 = vector.load %arg2[%c2_48, %c0_49, %c0_50] : memref<4x32x32xf32, #tpu.memory_space<vmem>>, vector<1x32x32xf32>
    %87 = vector.shape_cast %86 : vector<1x32x32xf32> to vector<32x32xf32>
    %88 = arith.mulf %87, %84 : vector<32x32xf32>
    %c2_51 = arith.constant 2 : index
    %c0_52 = arith.constant 0 : index
    %c0_53 = arith.constant 0 : index
    %89 = vector.load %arg3[%c2_51, %c0_52, %c0_53] : memref<4x32x32xf32, #tpu.memory_space<vmem>>, vector<1x32x32xf32>
    %90 = vector.shape_cast %89 : vector<1x32x32xf32> to vector<32x32xf32>
    %cst_54 = arith.constant dense<0.000000e+00> : vector<32x32xf32>
    %91 = tpu.matmul %90, %85, %cst_54 {dimension_numbers = #tpu.dot_dimension_numbers<[1], [0], [0], [1], [0, 0, 1, 1], [], []>} : vector<32x32xf32>, vector<32x32xf32>, vector<32x32xf32> -> vector<32x32xf32>
    %92 = arith.addf %88, %91 : vector<32x32xf32>
    %cst_55 = arith.constant dense<0.000000e+00> : vector<32xf32>
    %93 = vector.multi_reduction <add>, %92, %cst_55 [0] : vector<32x32xf32> to vector<32xf32>
    %94 = vector.shape_cast %93 : vector<32xf32> to vector<1x32xf32>
    %cst_56 = arith.constant 3.200000e+01 : f32
    %95 = vector.broadcast %cst_56 : f32 to vector<1x32xf32>
    %96 = arith.divf %94, %95 : vector<1x32xf32>
    %97 = arith.mulf %92, %92 : vector<32x32xf32>
    %cst_57 = arith.constant dense<0.000000e+00> : vector<32xf32>
    %98 = vector.multi_reduction <add>, %97, %cst_57 [0] : vector<32x32xf32> to vector<32xf32>
    %99 = vector.shape_cast %98 : vector<32xf32> to vector<1x32xf32>
    %cst_58 = arith.constant 3.200000e+01 : f32
    %100 = vector.broadcast %cst_58 : f32 to vector<1x32xf32>
    %101 = arith.divf %99, %100 : vector<1x32xf32>
    %102 = arith.mulf %96, %96 : vector<1x32xf32>
    %103 = arith.subf %101, %102 : vector<1x32xf32>
    %cst_59 = arith.constant 9.99999974E-6 : f32
    %104 = vector.broadcast %cst_59 : f32 to vector<1x32xf32>
    %105 = arith.addf %103, %104 : vector<1x32xf32>
    %106 = math.rsqrt %105 : vector<1x32xf32>
    %107 = vector.broadcast %96 : vector<1x32xf32> to vector<32x32xf32>
    %108 = arith.subf %92, %107 : vector<32x32xf32>
    %109 = vector.broadcast %106 : vector<1x32xf32> to vector<32x32xf32>
    %110 = arith.mulf %108, %109 : vector<32x32xf32>
    %c2_60 = arith.constant 2 : index
    %c0_61 = arith.constant 0 : index
    %c0_62 = arith.constant 0 : index
    %111 = vector.load %arg4[%c2_60, %c0_61, %c0_62] : memref<4x1x32xf32, #tpu.memory_space<vmem>>, vector<1x1x32xf32>
    %112 = vector.shape_cast %111 : vector<1x1x32xf32> to vector<1x32xf32>
    %113 = vector.broadcast %112 : vector<1x32xf32> to vector<32x32xf32>
    %114 = arith.mulf %110, %113 : vector<32x32xf32>
    %c2_63 = arith.constant 2 : index
    %c0_64 = arith.constant 0 : index
    %c0_65 = arith.constant 0 : index
    %115 = vector.load %arg5[%c2_63, %c0_64, %c0_65] : memref<4x1x32xf32, #tpu.memory_space<vmem>>, vector<1x1x32xf32>
    %116 = vector.shape_cast %115 : vector<1x1x32xf32> to vector<1x32xf32>
    %117 = vector.broadcast %116 : vector<1x32xf32> to vector<32x32xf32>
    %118 = arith.addf %114, %117 : vector<32x32xf32>
    %cst_66 = arith.constant 0.000000e+00 : f32
    %119 = vector.broadcast %cst_66 : f32 to vector<32x32xf32>
    %120 = arith.maximumf %118, %119 : vector<32x32xf32>
    %c3 = arith.constant 3 : index
    %c0_67 = arith.constant 0 : index
    %c0_68 = arith.constant 0 : index
    %121 = vector.load %arg1[%c3, %c0_67, %c0_68] : memref<4x32x64xf32, #tpu.memory_space<vmem>>, vector<1x32x64xf32>
    %122 = vector.shape_cast %121 : vector<1x32x64xf32> to vector<32x64xf32>
    %cst_69 = arith.constant dense<0.000000e+00> : vector<32x64xf32>
    %123 = tpu.matmul %120, %122, %cst_69 {dimension_numbers = #tpu.dot_dimension_numbers<[1], [0], [0], [1], [0, 0, 1, 1], [], []>} : vector<32x32xf32>, vector<32x64xf32>, vector<32x64xf32> -> vector<32x64xf32>
    %124 = vector.extract_strided_slice %123 {offsets = [0, 0], sizes = [32, 32], strides = [1, 1]} : vector<32x64xf32> to vector<32x32xf32>
    %125 = vector.extract_strided_slice %123 {offsets = [0, 32], sizes = [32, 32], strides = [1, 1]} : vector<32x64xf32> to vector<32x32xf32>
    %c3_70 = arith.constant 3 : index
    %c0_71 = arith.constant 0 : index
    %c0_72 = arith.constant 0 : index
    %126 = vector.load %arg2[%c3_70, %c0_71, %c0_72] : memref<4x32x32xf32, #tpu.memory_space<vmem>>, vector<1x32x32xf32>
    %127 = vector.shape_cast %126 : vector<1x32x32xf32> to vector<32x32xf32>
    %128 = arith.mulf %127, %124 : vector<32x32xf32>
    %c3_73 = arith.constant 3 : index
    %c0_74 = arith.constant 0 : index
    %c0_75 = arith.constant 0 : index
    %129 = vector.load %arg3[%c3_73, %c0_74, %c0_75] : memref<4x32x32xf32, #tpu.memory_space<vmem>>, vector<1x32x32xf32>
    %130 = vector.shape_cast %129 : vector<1x32x32xf32> to vector<32x32xf32>
    %cst_76 = arith.constant dense<0.000000e+00> : vector<32x32xf32>
    %131 = tpu.matmul %130, %125, %cst_76 {dimension_numbers = #tpu.dot_dimension_numbers<[1], [0], [0], [1], [0, 0, 1, 1], [], []>} : vector<32x32xf32>, vector<32x32xf32>, vector<32x32xf32> -> vector<32x32xf32>
    %132 = arith.addf %128, %131 : vector<32x32xf32>
    %cst_77 = arith.constant dense<0.000000e+00> : vector<32xf32>
    %133 = vector.multi_reduction <add>, %132, %cst_77 [0] : vector<32x32xf32> to vector<32xf32>
    %134 = vector.shape_cast %133 : vector<32xf32> to vector<1x32xf32>
    %cst_78 = arith.constant 3.200000e+01 : f32
    %135 = vector.broadcast %cst_78 : f32 to vector<1x32xf32>
    %136 = arith.divf %134, %135 : vector<1x32xf32>
    %137 = arith.mulf %132, %132 : vector<32x32xf32>
    %cst_79 = arith.constant dense<0.000000e+00> : vector<32xf32>
    %138 = vector.multi_reduction <add>, %137, %cst_79 [0] : vector<32x32xf32> to vector<32xf32>
    %139 = vector.shape_cast %138 : vector<32xf32> to vector<1x32xf32>
    %cst_80 = arith.constant 3.200000e+01 : f32
    %140 = vector.broadcast %cst_80 : f32 to vector<1x32xf32>
    %141 = arith.divf %139, %140 : vector<1x32xf32>
    %142 = arith.mulf %136, %136 : vector<1x32xf32>
    %143 = arith.subf %141, %142 : vector<1x32xf32>
    %cst_81 = arith.constant 9.99999974E-6 : f32
    %144 = vector.broadcast %cst_81 : f32 to vector<1x32xf32>
    %145 = arith.addf %143, %144 : vector<1x32xf32>
    %146 = math.rsqrt %145 : vector<1x32xf32>
    %147 = vector.broadcast %136 : vector<1x32xf32> to vector<32x32xf32>
    %148 = arith.subf %132, %147 : vector<32x32xf32>
    %149 = vector.broadcast %146 : vector<1x32xf32> to vector<32x32xf32>
    %150 = arith.mulf %148, %149 : vector<32x32xf32>
    %c3_82 = arith.constant 3 : index
    %c0_83 = arith.constant 0 : index
    %c0_84 = arith.constant 0 : index
    %151 = vector.load %arg4[%c3_82, %c0_83, %c0_84] : memref<4x1x32xf32, #tpu.memory_space<vmem>>, vector<1x1x32xf32>
    %152 = vector.shape_cast %151 : vector<1x1x32xf32> to vector<1x32xf32>
    %153 = vector.broadcast %152 : vector<1x32xf32> to vector<32x32xf32>
    %154 = arith.mulf %150, %153 : vector<32x32xf32>
    %c3_85 = arith.constant 3 : index
    %c0_86 = arith.constant 0 : index
    %c0_87 = arith.constant 0 : index
    %155 = vector.load %arg5[%c3_85, %c0_86, %c0_87] : memref<4x1x32xf32, #tpu.memory_space<vmem>>, vector<1x1x32xf32>
    %156 = vector.shape_cast %155 : vector<1x1x32xf32> to vector<1x32xf32>
    %157 = vector.broadcast %156 : vector<1x32xf32> to vector<32x32xf32>
    %158 = arith.addf %154, %157 : vector<32x32xf32>
    %cst_88 = arith.constant 0.000000e+00 : f32
    %159 = vector.broadcast %cst_88 : f32 to vector<32x32xf32>
    %160 = arith.maximumf %158, %159 : vector<32x32xf32>
    %c0_89 = arith.constant 0 : index
    %c0_90 = arith.constant 0 : index
    %161 = vector.load %arg6[%c0_89, %c0_90] : memref<32x32xf32, #tpu.memory_space<vmem>>, vector<32x32xf32>
    tpu.vector_store %arg6[%c0_89, %c0_90], %160 {strides = array<i32>} : memref<32x32xf32, #tpu.memory_space<vmem>>, vector<32x32xf32>,
    return
  }
}

</mosaic_0001>

<llo_original>
// kernel: simple_sem_gcn.1
$region0: #{simple_sem_gcn.1}
  #allocation0 [shape = 'u32[]', space=smem, size = 0x4, offset = 0x4, fixed_abs, tag = 'smem constant byte address 0x4 - core index']
  #allocation1 [shape = 'u32[144,128]{1,0:T(1,128)}', space=vmem, size = 0x12000, scoped, tag = 'internal scratch']
  %s0 = inlined_call_operand.hbm [shape: f32[32,32], index: 0, kind: input, shape index: {}]
  %s1 = inlined_call_operand.hbm [shape: f32[4,32,64], index: 1, kind: input, shape index: {}]
  %s2 = inlined_call_operand.hbm [shape: f32[4,32,32], index: 2, kind: input, shape index: {}]
  %s3 = inlined_call_operand.hbm [shape: f32[4,32,32], index: 3, kind: input, shape index: {}]
  %s4 = inlined_call_operand.vmem [shape: f32[4,1,32], index: 4, kind: input, shape index: {}]
  %s5 = inlined_call_operand.vmem [shape: f32[4,1,32], index: 5, kind: input, shape index: {}]
  %s6 = inlined_call_operand.hbm [shape: f32[32,32], index: 6, kind: output, shape index: {}]
  %s7 = sld [smem:[#allocation0]]
  $region50: #{simple_sem_gcn.1} parent=0
    _
  %s9 = ssub.s32 1, %s7
  %s10 = scalar_select 0, %s9, %s7
  $region1: #{simple_sem_gcn.1} parent=0
    #allocation2 [shape = 'u8[16384]{0}', space=vmem, size = 0x4000, scoped, tag = 'input window, operand 0, single buffered']
    #allocation3 [shape = 's32[1]{0}', space=sflag, size = 0x4, scoped, tag = 'scoped memory for simple_sem_gcn.1']
    #allocation4 [shape = 's32[1]{0}', space=sflag, size = 0x4, scoped, tag = 'scoped memory for simple_sem_gcn.1']
    #allocation5 [shape = 'u8[65536]{0}', space=vmem, size = 0x10000, scoped, tag = 'input window, operand 1, single buffered']
    #allocation6 [shape = 's32[1]{0}', space=sflag, size = 0x4, scoped, tag = 'scoped memory for simple_sem_gcn.1']
    #allocation7 [shape = 'u8[65536]{0}', space=vmem, size = 0x10000, scoped, tag = 'input window, operand 2, single buffered']
    #allocation8 [shape = 'u8[65536]{0}', space=vmem, size = 0x10000, scoped, tag = 'input window, operand 3, single buffered']
    #allocation9 [shape = 's32[1]{0}', space=sflag, size = 0x4, scoped, tag = 'scoped memory for simple_sem_gcn.1']
    #allocation10 [shape = 'u8[16384]{0}', space=vmem, size = 0x4000, scoped, tag = 'output window, operand 0, single buffered']
    %11 = vsyncpa [#allocation3], 0
    %12 = vsyncpa [#allocation6], 0
    %13 = vsyncpa [#allocation9], 0
    %14 = vsyncpa [#allocation4], 0
    // Predicated region
    $region2: #{simple_sem_gcn.1} parent=1 // pred_check
      _
    $region3: #{simple_sem_gcn.1} parent=1 // pred_check_branch
      %16 = sbr.rel (0) target = $region5
    $region4: #{simple_sem_gcn.1} parent=1 // pred_region
      %s18 = ssub.s32 512, 512
      %19 = vsyncadd [#allocation3], %s18
      %s20 = sshll.u32 [#allocation2], 4
      %s21 = int_to_ptr.vmem [resolvable:$true] %s20
      %26 = dma.hbm_to_vmem [thread:$0]  %s0, 512, %s21, [#allocation3], 128, 128, 8
    $region5: #{simple_sem_gcn.1} parent=1 // pred_fallthru
      _
    // Predicated region
    $region6: #{simple_sem_gcn.1} parent=1 // pred_check
      _
    $region7: #{simple_sem_gcn.1} parent=1 // pred_check_branch
      %28 = sbr.rel (0) target = $region9
    $region8: #{simple_sem_gcn.1} parent=1 // pred_region
      %s30 = ssub.s32 2048, 2048
      %31 = vsyncadd [#allocation6], %s30
      %s32 = sshll.u32 [#allocation5], 4
      %s33 = int_to_ptr.vmem [resolvable:$true] %s32
      %38 = dma.hbm_to_vmem [thread:$0]  %s1, 2048, %s33, [#allocation6], 128, 128, 8
    $region9: #{simple_sem_gcn.1} parent=1 // pred_fallthru
      _
    // Predicated region
    $region10: #{simple_sem_gcn.1} parent=1 // pred_check
      _
    $region11: #{simple_sem_gcn.1} parent=1 // pred_check_branch
      %40 = sbr.rel (0) target = $region13
    $region12: #{simple_sem_gcn.1} parent=1 // pred_region
      %s42 = ssub.s32 2048, 2048
      %43 = vsyncadd [#allocation6], %s42
      %s44 = sshll.u32 [#allocation7], 4
      %s45 = int_to_ptr.vmem [resolvable:$true] %s44
      %50 = dma.hbm_to_vmem [thread:$0]  %s2, 2048, %s45, [#allocation6], 128, 128, 8
    $region13: #{simple_sem_gcn.1} parent=1 // pred_fallthru
      _
    // Predicated region
    $region14: #{simple_sem_gcn.1} parent=1 // pred_check
      _
    $region15: #{simple_sem_gcn.1} parent=1 // pred_check_branch
      %52 = sbr.rel (0) target = $region17
    $region16: #{simple_sem_gcn.1} parent=1 // pred_region
      %s54 = ssub.s32 2048, 2048
      %55 = vsyncadd [#allocation9], %s54
      %s56 = sshll.u32 [#allocation8], 4
      %s57 = int_to_ptr.vmem [resolvable:$true] %s56
      %62 = dma.hbm_to_vmem [thread:$0]  %s3, 2048, %s57, [#allocation9], 128, 128, 8
    $region17: #{simple_sem_gcn.1} parent=1 // pred_fallthru
      _
    // Predicated region
    $region18: #{simple_sem_gcn.1} parent=1 // pred_check
      _
    $region19: #{simple_sem_gcn.1} parent=1 // pred_check_branch
      %64 = sbr.rel (0) target = $region21
    $region20: #{simple_sem_gcn.1} parent=1 // pred_region
      _
    $region21: #{simple_sem_gcn.1} parent=1 // pred_fallthru
      _
    // Predicated region
    $region22: #{simple_sem_gcn.1} parent=1 // pred_check
      _
    $region23: #{simple_sem_gcn.1} parent=1 // pred_check_branch
      %66 = sbr.rel (0) target = $region25
    $region24: #{simple_sem_gcn.1} parent=1 // pred_region
      _
    $region25: #{simple_sem_gcn.1} parent=1 // pred_fallthru
      _
    // Predicated region
    $region26: #{simple_sem_gcn.1} parent=1 // pred_check
      _
    $region27: #{simple_sem_gcn.1} parent=1 // pred_check_branch
      %68 = sbr.rel (0) target = $region29
    $region28: #{simple_sem_gcn.1} parent=1 // pred_region
      %69 = dma.done [#allocation3], 512
    $region29: #{simple_sem_gcn.1} parent=1 // pred_fallthru
      _
    // Predicated region
    $region30: #{simple_sem_gcn.1} parent=1 // pred_check
      _
    $region31: #{simple_sem_gcn.1} parent=1 // pred_check_branch
      %71 = sbr.rel (0) target = $region33
    $region32: #{simple_sem_gcn.1} parent=1 // pred_region
      %72 = dma.done [#allocation6], 2048
    $region33: #{simple_sem_gcn.1} parent=1 // pred_fallthru
      _
    // Predicated region
    $region34: #{simple_sem_gcn.1} parent=1 // pred_check
      _
    $region35: #{simple_sem_gcn.1} parent=1 // pred_check_branch
      %74 = sbr.rel (0) target = $region37
    $region36: #{simple_sem_gcn.1} parent=1 // pred_region
      %75 = dma.done [#allocation6], 2048
    $region37: #{simple_sem_gcn.1} parent=1 // pred_fallthru
      _
    // Predicated region
    $region38: #{simple_sem_gcn.1} parent=1 // pred_check
      _
    $region39: #{simple_sem_gcn.1} parent=1 // pred_check_branch
      %77 = sbr.rel (0) target = $region41
    $region40: #{simple_sem_gcn.1} parent=1 // pred_region
      %78 = dma.done [#allocation9], 2048
    $region41: #{simple_sem_gcn.1} parent=1 // pred_fallthru
      _
    %v79 = vld [vmem:[#allocation2] sm:$0xff]
    %v80 = vld [vmem:[#allocation2 + $0x8] sm:$0xff]
    %v81 = vld [vmem:[#allocation2 + $0x10] sm:$0xff]
    %v82 = vld [vmem:[#allocation2 + $0x18] sm:$0xff]
    %v83 = vld [vmem:[#allocation5] sm:$0xff]
    %v84 = vld [vmem:[#allocation5 + $0x8] sm:$0xff]
    %v85 = vld [vmem:[#allocation5 + $0x10] sm:$0xff]
    %v86 = vld [vmem:[#allocation5 + $0x18] sm:$0xff]
    %vm87 = vcmask 261120
    %v89 = vsel %vm87, %v79, 0
    %v92 = vsel %vm87, %v80, 0
    %v95 = vsel %vm87, %v81, 0
    %v98 = vsel %vm87, %v82, 0
    %100 = vmatprep.subr.mxu0 0.0
    %101 = vmatpush1.msra.mxu0 %v83
    %102 = vmatprep.subr.mxu0 0.0
    %103 = vmatpush1.msra.mxu0 %v84
    %104 = vmatprep.subr.mxu0 0.0
    %105 = vmatpush1.msra.mxu0 %v85
    %106 = vmatprep.subr.mxu0 0.0
    %107 = vmatpush1.msra.mxu0 %v86
    %108 = vmatprep.subr.mxu0 0.0
    %109 = vmatpush1.msra.mxu0 0.0
    %110 = vmatprep.subr.mxu0 0.0
    %111 = vmatpush1.msra.mxu0 0.0
    %112 = vmatprep.subr.mxu0 0.0
    %113 = vmatpush1.msra.mxu0 0.0
    %114 = vmatprep.subr.mxu0 0.0
    %115 = vmatpush1.msra.mxu0 0.0
    %116 = vmatprep.subr.mxu0 0.0
    %117 = vmatpush1.msra.mxu0 0.0
    %118 = vmatprep.subr.mxu0 0.0
    %119 = vmatpush1.msra.mxu0 0.0
    %120 = vmatprep.subr.mxu0 0.0
    %121 = vmatpush1.msra.mxu0 0.0
    %122 = vmatprep.subr.mxu0 0.0
    %123 = vmatpush1.msra.mxu0 0.0
    %124 = vmatprep.subr.mxu0 0.0
    %125 = vmatpush1.msra.mxu0 0.0
    %126 = vmatprep.subr.mxu0 0.0
    %127 = vmatpush1.msra.mxu0 0.0
    %128 = vmatprep.subr.mxu0 0.0
    %129 = vmatpush1.msra.mxu0 0.0
    %130 = vmatprep.subr.mxu0 0.0
    %131 = vmatpush1.msra.mxu0 0.0
    %132 = vmatprep.subr.mxu0 0.0
    %133 = vmatpush1.msra.mxu0 0.0
    %134 = vmatprep.subr.mxu0 0.0
    %135 = vmatpush1.msra.mxu0 0.0
    %136 = vmatprep.subr.mxu0 0.0
    %137 = vmatpush1.msra.mxu0 0.0
    %138 = vmatprep.subr.mxu0 0.0
    %139 = vmatpush1.msra.mxu0 0.0
    %140 = vmatprep.subr.mxu0 0.0
    %141 = vmatpush1.msra.mxu0 0.0
    %142 = vmatprep.subr.mxu0 0.0
    %143 = vmatpush1.msra.mxu0 0.0
    %144 = vmatprep.subr.mxu0 0.0
    %145 = vmatpush1.msra.mxu0 0.0
    %146 = vmatprep.subr.mxu0 0.0
    %147 = vmatpush1.msra.mxu0 0.0
    %148 = vmatprep.subr.mxu0 0.0
    %149 = vmatpush1.msra.mxu0 0.0
    %150 = vmatprep.subr.mxu0 0.0
    %151 = vmatpush1.msra.mxu0 0.0
    %152 = vmatprep.subr.mxu0 0.0
    %153 = vmatpush1.msra.mxu0 0.0
    %154 = vmatprep.subr.mxu0 0.0
    %155 = vmatpush1.msra.mxu0 0.0
    %156 = vmatprep.subr.mxu0 0.0
    %157 = vmatpush1.msra.mxu0 0.0
    %158 = vmatprep.subr.mxu0 0.0
    %159 = vmatpush1.msra.mxu0 0.0
    %160 = vmatprep.subr.mxu0 0.0
    %161 = vmatpush1.msra.mxu0 0.0
    %162 = vmatprep.subr.mxu0 0.0
    %163 = vmatpush1.msra.mxu0 0.0
    %164 = vmatprep.mubr.f32.mxu0 0.0
    %165 = vmatmul.mubr.f32.gmra.mrb[0].mxu0 %v89
    %v166 = vpop.f32.mrb[0].mxu0
    %v167 = vadd.f32 0.0, %v166
    %v168 = vpop.f32.mrb[0].mxu0
    %169 = vmatprep.mubr.f32.mxu0 0.0
    %170 = vmatmul.mubr.f32.gmra.mrb[0].mxu0 %v92
    %v171 = vpop.f32.mrb[0].mxu0
    %v172 = vadd.f32 0.0, %v171
    %v173 = vpop.f32.mrb[0].mxu0
    %174 = vmatprep.mubr.f32.mxu0 0.0
    %175 = vmatmul.mubr.f32.gmra.mrb[0].mxu0 %v95
    %v176 = vpop.f32.mrb[0].mxu0
    %v177 = vadd.f32 0.0, %v176
    %v178 = vpop.f32.mrb[0].mxu0
    %179 = vmatprep.mubr.f32.mxu0 0.0
    %180 = vmatmul.mubr.f32.gmra.mrb[0].mxu0 %v98
    %v181 = vpop.f32.mrb[0].mxu0
    %v182 = vadd.f32 0.0, %v181
    %v183 = vpop.f32.mrb[0].mxu0
    %184 = vdwg.mxu0
    %v185 = vld [vmem:[#allocation7] sm:$0xff]
    %v186 = vld [vmem:[#allocation7 + $0x8] sm:$0xff]
    %v187 = vld [vmem:[#allocation7 + $0x10] sm:$0xff]
    %v188 = vld [vmem:[#allocation7 + $0x18] sm:$0xff]
    %v189 = vmul.f32 %v185, %v167
    %v190 = vmul.f32 %v186, %v172
    %v191 = vmul.f32 %v187, %v177
    %v192 = vmul.f32 %v188, %v182
    %v193 = vld [vmem:[#allocation8] sm:$0xff]
    %v194 = vld [vmem:[#allocation8 + $0x8] sm:$0xff]
    %v195 = vld [vmem:[#allocation8 + $0x10] sm:$0xff]
    %v196 = vld [vmem:[#allocation8 + $0x18] sm:$0xff]
    %201 = vrot.lane.b32.xlu0 %v167, 96
    %v202 = vpop.permute.xlu0 %201
    %203 = vrot.lane.b32.xlu0 %v172, 96
    %v204 = vpop.permute.xlu0 %203
    %205 = vrot.lane.b32.xlu0 %v177, 96
    %v206 = vpop.permute.xlu0 %205
    %207 = vrot.lane.b32.xlu0 %v182, 96
    %v208 = vpop.permute.xlu0 %207
    %v214 = vsel %vm87, %v193, 0
    %v217 = vsel %vm87, %v194, 0
    %v220 = vsel %vm87, %v195, 0
    %v223 = vsel %vm87, %v196, 0
    %225 = vmatprep.subr.mxu0 0.0
    %226 = vmatpush1.msra.mxu0 %v202
    %227 = vmatprep.subr.mxu0 0.0
    %228 = vmatpush1.msra.mxu0 %v204
    %229 = vmatprep.subr.mxu0 0.0
    %230 = vmatpush1.msra.mxu0 %v206
    %231 = vmatprep.subr.mxu0 0.0
    %232 = vmatpush1.msra.mxu0 %v208
    %233 = vmatprep.subr.mxu0 0.0
    %234 = vmatpush1.msra.mxu0 0.0
    %235 = vmatprep.subr.mxu0 0.0
    %236 = vmatpush1.msra.mxu0 0.0
    %237 = vmatprep.subr.mxu0 0.0
    %238 = vmatpush1.msra.mxu0 0.0
    %239 = vmatprep.subr.mxu0 0.0
    %240 = vmatpush1.msra.mxu0 0.0
    %241 = vmatprep.subr.mxu0 0.0
    %242 = vmatpush1.msra.mxu0 0.0
    %243 = vmatprep.subr.mxu0 0.0
    %244 = vmatpush1.msra.mxu0 0.0
    %245 = vmatprep.subr.mxu0 0.0
    %246 = vmatpush1.msra.mxu0 0.0
    %247 = vmatprep.subr.mxu0 0.0
    %248 = vmatpush1.msra.mxu0 0.0
    %249 = vmatprep.subr.mxu0 0.0
    %250 = vmatpush1.msra.mxu0 0.0
    %251 = vmatprep.subr.mxu0 0.0
    %252 = vmatpush1.msra.mxu0 0.0
    %253 = vmatprep.subr.mxu0 0.0
    %254 = vmatpush1.msra.mxu0 0.0
    %255 = vmatprep.subr.mxu0 0.0
    %256 = vmatpush1.msra.mxu0 0.0
    %257 = vmatprep.subr.mxu0 0.0
    %258 = vmatpush1.msra.mxu0 0.0
    %259 = vmatprep.subr.mxu0 0.0
    %260 = vmatpush1.msra.mxu0 0.0
    %261 = vmatprep.subr.mxu0 0.0
    %262 = vmatpush1.msra.mxu0 0.0
    %263 = vmatprep.subr.mxu0 0.0
    %264 = vmatpush1.msra.mxu0 0.0
    %265 = vmatprep.subr.mxu0 0.0
    %266 = vmatpush1.msra.mxu0 0.0
    %267 = vmatprep.subr.mxu0 0.0
    %268 = vmatpush1.msra.mxu0 0.0
    %269 = vmatprep.subr.mxu0 0.0
    %270 = vmatpush1.msra.mxu0 0.0
    %271 = vmatprep.subr.mxu0 0.0
    %272 = vmatpush1.msra.mxu0 0.0
    %273 = vmatprep.subr.mxu0 0.0
    %274 = vmatpush1.msra.mxu0 0.0
    %275 = vmatprep.subr.mxu0 0.0
    %276 = vmatpush1.msra.mxu0 0.0
    %277 = vmatprep.subr.mxu0 0.0
    %278 = vmatpush1.msra.mxu0 0.0
    %279 = vmatprep.subr.mxu0 0.0
    %280 = vmatpush1.msra.mxu0 0.0
    %281 = vmatprep.subr.mxu0 0.0
    %282 = vmatpush1.msra.mxu0 0.0
    %283 = vmatprep.subr.mxu0 0.0
    %284 = vmatpush1.msra.mxu0 0.0
    %285 = vmatprep.subr.mxu0 0.0
    %286 = vmatpush1.msra.mxu0 0.0
    %287 = vmatprep.subr.mxu0 0.0
    %288 = vmatpush1.msra.mxu0 0.0
    %289 = vmatprep.mubr.f32.mxu0 0.0
    %290 = vmatmul.mubr.f32.gmra.mrb[0].mxu0 %v214
    %v291 = vpop.f32.mrb[0].mxu0
    %v292 = vadd.f32 0.0, %v291
    %v293 = vpop.f32.mrb[0].mxu0
    %294 = vmatprep.mubr.f32.mxu0 0.0
    %295 = vmatmul.mubr.f32.gmra.mrb[0].mxu0 %v217
    %v296 = vpop.f32.mrb[0].mxu0
    %v297 = vadd.f32 0.0, %v296
    %v298 = vpop.f32.mrb[0].mxu0
    %299 = vmatprep.mubr.f32.mxu0 0.0
    %300 = vmatmul.mubr.f32.gmra.mrb[0].mxu0 %v220
    %v301 = vpop.f32.mrb[0].mxu0
    %v302 = vadd.f32 0.0, %v301
    %v303 = vpop.f32.mrb[0].mxu0
    %304 = vmatprep.mubr.f32.mxu0 0.0
    %305 = vmatmul.mubr.f32.gmra.mrb[0].mxu0 %v223
    %v306 = vpop.f32.mrb[0].mxu0
    %v307 = vadd.f32 0.0, %v306
    %v308 = vpop.f32.mrb[0].mxu0
    %309 = vdwg.mxu0
    %v310 = vadd.f32 %v189, %v292
    %v311 = vadd.f32 %v190, %v297
    %v312 = vadd.f32 %v191, %v302
    %v313 = vadd.f32 %v192, %v307
    %v314 = vsel %vm87, %v310, 0.0
    %v315 = vsel %vm87, %v311, 0.0
    %v316 = vadd.f32 %v314, %v315
    %v317 = vsel %vm87, %v312, 0.0
    %v318 = vadd.f32 %v316, %v317
    %v319 = vsel %vm87, %v313, 0.0
    %v320 = vadd.f32 %v318, %v319
    %v321 = vrot.slane %v320, 4
    %v322 = vadd.f32 %v320, %v321
    %v323 = vrot.slane %v322, 2
    %v324 = vadd.f32 %v322, %v323
    %v325 = vrot.slane %v324, 1
    %v326 = vadd.f32 %v324, %v325
    %v327 = vrcp.pop 32.0
    %v328 = vmul.f32 %v326, %v327
    %v329 = vmul.f32 %v310, %v310
    %v330 = vmul.f32 %v311, %v311
    %v331 = vmul.f32 %v312, %v312
    %v332 = vmul.f32 %v313, %v313
    %v333 = vsel %vm87, %v329, 0.0
    %v334 = vsel %vm87, %v330, 0.0
    %v335 = vadd.f32 %v333, %v334
    %v336 = vsel %vm87, %v331, 0.0
    %v337 = vadd.f32 %v335, %v336
    %v338 = vsel %vm87, %v332, 0.0
    %v339 = vadd.f32 %v337, %v338
    %v340 = vrot.slane %v339, 4
    %v341 = vadd.f32 %v339, %v340
    %v342 = vrot.slane %v341, 2
    %v343 = vadd.f32 %v341, %v342
    %v344 = vrot.slane %v343, 1
    %v345 = vadd.f32 %v343, %v344
    %v346 = vmul.f32 %v345, %v327
    %v347 = vmul.f32 %v328, %v328
    %v348 = vsub.f32 %v346, %v347
    %v349 = vadd.f32 %v348, 1e-05
    %v350 = vrsqrt.pop %v349
    %v351 = vsub.f32 %v310, %v328
    %v352 = vsub.f32 %v311, %v328
    %v353 = vsub.f32 %v312, %v328
    %v354 = vsub.f32 %v313, %v328
    %v355 = vmul.f32 %v351, %v350
    %v356 = vmul.f32 %v352, %v350
    %v357 = vmul.f32 %v353, %v350
    %v358 = vmul.f32 %v354, %v350
    %v359 = vld [vmem:[%s4] sm:$0x1]
    %v361 = vlaneseq
    %v362 = vshrl.u32 %v361, 7
    %v363 = vsub.s32 0, %v362
    %v364 = vrot.slane %v359, %v363
    %v366 = vmul.f32 %v355, %v364
    %v367 = vmul.f32 %v356, %v364
    %v368 = vmul.f32 %v357, %v364
    %v369 = vmul.f32 %v358, %v364
    %v370 = vld [vmem:[%s5] sm:$0x1]
    %v372 = vlaneseq
    %v373 = vshrl.u32 %v372, 7
    %v374 = vsub.s32 0, %v373
    %v375 = vrot.slane %v370, %v374
    %v377 = vadd.f32 %v366, %v375
    %v378 = vadd.f32 %v367, %v375
    %v379 = vadd.f32 %v368, %v375
    %v380 = vadd.f32 %v369, %v375
    %v381 = vmax.f32 %v377, 0.0
    %v382 = vmax.f32 %v378, 0.0
    %v383 = vmax.f32 %v379, 0.0
    %v384 = vmax.f32 %v380, 0.0
    %s385 = scalar_lea.vmem [#allocation5], 32
    %v386 = vld [vmem:[%s385] sm:$0xff]
    %v387 = vld [vmem:[%s385 + $0x8] sm:$0xff]
    %v388 = vld [vmem:[%s385 + $0x10] sm:$0xff]
    %v389 = vld [vmem:[%s385 + $0x18] sm:$0xff]
    %v391 = vsel %vm87, %v381, 0
    %v394 = vsel %vm87, %v382, 0
    %v397 = vsel %vm87, %v383, 0
    %v400 = vsel %vm87, %v384, 0
    %402 = vmatprep.subr.mxu0 0.0
    %403 = vmatpush1.msra.mxu0 %v386
    %404 = vmatprep.subr.mxu0 0.0
    %405 = vmatpush1.msra.mxu0 %v387
    %406 = vmatprep.subr.mxu0 0.0
    %407 = vmatpush1.msra.mxu0 %v388
    %408 = vmatprep.subr.mxu0 0.0
    %409 = vmatpush1.msra.mxu0 %v389
    %410 = vmatprep.subr.mxu0 0.0
    %411 = vmatpush1.msra.mxu0 0.0
    %412 = vmatprep.subr.mxu0 0.0
    %413 = vmatpush1.msra.mxu0 0.0
    %414 = vmatprep.subr.mxu0 0.0
    %415 = vmatpush1.msra.mxu0 0.0
    %416 = vmatprep.subr.mxu0 0.0
    %417 = vmatpush1.msra.mxu0 0.0
    %418 = vmatprep.subr.mxu0 0.0
    %419 = vmatpush1.msra.mxu0 0.0
    %420 = vmatprep.subr.mxu0 0.0
    %421 = vmatpush1.msra.mxu0 0.0
    %422 = vmatprep.subr.mxu0 0.0
    %423 = vmatpush1.msra.mxu0 0.0
    %424 = vmatprep.subr.mxu0 0.0
    %425 = vmatpush1.msra.mxu0 0.0
    %426 = vmatprep.subr.mxu0 0.0
    %427 = vmatpush1.msra.mxu0 0.0
    %428 = vmatprep.subr.mxu0 0.0
    %429 = vmatpush1.msra.mxu0 0.0
    %430 = vmatprep.subr.mxu0 0.0
    %431 = vmatpush1.msra.mxu0 0.0
    %432 = vmatprep.subr.mxu0 0.0
    %433 = vmatpush1.msra.mxu0 0.0
    %434 = vmatprep.subr.mxu0 0.0
    %435 = vmatpush1.msra.mxu0 0.0
    %436 = vmatprep.subr.mxu0 0.0
    %437 = vmatpush1.msra.mxu0 0.0
    %438 = vmatprep.subr.mxu0 0.0
    %439 = vmatpush1.msra.mxu0 0.0
    %440 = vmatprep.subr.mxu0 0.0
    %441 = vmatpush1.msra.mxu0 0.0
    %442 = vmatprep.subr.mxu0 0.0
    %443 = vmatpush1.msra.mxu0 0.0
    %444 = vmatprep.subr.mxu0 0.0
    %445 = vmatpush1.msra.mxu0 0.0
    %446 = vmatprep.subr.mxu0 0.0
    %447 = vmatpush1.msra.mxu0 0.0
    %448 = vmatprep.subr.mxu0 0.0
    %449 = vmatpush1.msra.mxu0 0.0
    %450 = vmatprep.subr.mxu0 0.0
    %451 = vmatpush1.msra.mxu0 0.0
    %452 = vmatprep.subr.mxu0 0.0
    %453 = vmatpush1.msra.mxu0 0.0
    %454 = vmatprep.subr.mxu0 0.0
    %455 = vmatpush1.msra.mxu0 0.0
    %456 = vmatprep.subr.mxu0 0.0
    %457 = vmatpush1.msra.mxu0 0.0
    %458 = vmatprep.subr.mxu0 0.0
    %459 = vmatpush1.msra.mxu0 0.0
    %460 = vmatprep.subr.mxu0 0.0
    %461 = vmatpush1.msra.mxu0 0.0
    %462 = vmatprep.subr.mxu0 0.0
    %463 = vmatpush1.msra.mxu0 0.0
    %464 = vmatprep.subr.mxu0 0.0
    %465 = vmatpush1.msra.mxu0 0.0
    %466 = vmatprep.mubr.f32.mxu0 0.0
    %467 = vmatmul.mubr.f32.gmra.mrb[0].mxu0 %v391
    %v468 = vpop.f32.mrb[0].mxu0
    %v469 = vadd.f32 0.0, %v468
    %v470 = vpop.f32.mrb[0].mxu0
    %471 = vmatprep.mubr.f32.mxu0 0.0
    %472 = vmatmul.mubr.f32.gmra.mrb[0].mxu0 %v394
    %v473 = vpop.f32.mrb[0].mxu0
    %v474 = vadd.f32 0.0, %v473
    %v475 = vpop.f32.mrb[0].mxu0
    %476 = vmatprep.mubr.f32.mxu0 0.0
    %477 = vmatmul.mubr.f32.gmra.mrb[0].mxu0 %v397
    %v478 = vpop.f32.mrb[0].mxu0
    %v479 = vadd.f32 0.0, %v478
    %v480 = vpop.f32.mrb[0].mxu0
    %481 = vmatprep.mubr.f32.mxu0 0.0
    %482 = vmatmul.mubr.f32.gmra.mrb[0].mxu0 %v400
    %v483 = vpop.f32.mrb[0].mxu0
    %v484 = vadd.f32 0.0, %v483
    %v485 = vpop.f32.mrb[0].mxu0
    %486 = vdwg.mxu0
    %s487 = scalar_lea.vmem [#allocation7], 32
    %v488 = vld [vmem:[%s487] sm:$0xff]
    %v489 = vld [vmem:[%s487 + $0x8] sm:$0xff]
    %v490 = vld [vmem:[%s487 + $0x10] sm:$0xff]
    %v491 = vld [vmem:[%s487 + $0x18] sm:$0xff]
    %v492 = vmul.f32 %v488, %v469
    %v493 = vmul.f32 %v489, %v474
    %v494 = vmul.f32 %v490, %v479
    %v495 = vmul.f32 %v491, %v484
    %s496 = scalar_lea.vmem [#allocation8], 32
    %v497 = vld [vmem:[%s496] sm:$0xff]
    %v498 = vld [vmem:[%s496 + $0x8] sm:$0xff]
    %v499 = vld [vmem:[%s496 + $0x10] sm:$0xff]
    %v500 = vld [vmem:[%s496 + $0x18] sm:$0xff]
    %505 = vrot.lane.b32.xlu0 %v469, 96
    %v506 = vpop.permute.xlu0 %505
    %507 = vrot.lane.b32.xlu0 %v474, 96
    %v508 = vpop.permute.xlu0 %507
    %509 = vrot.lane.b32.xlu0 %v479, 96
    %v510 = vpop.permute.xlu0 %509
    %511 = vrot.lane.b32.xlu0 %v484, 96
    %v512 = vpop.permute.xlu0 %511
    %v518 = vsel %vm87, %v497, 0
    %v521 = vsel %vm87, %v498, 0
    %v524 = vsel %vm87, %v499, 0
    %v527 = vsel %vm87, %v500, 0
    %529 = vmatprep.subr.mxu0 0.0
    %530 = vmatpush1.msra.mxu0 %v506
    %531 = vmatprep.subr.mxu0 0.0
    %532 = vmatpush1.msra.mxu0 %v508
    %533 = vmatprep.subr.mxu0 0.0
    %534 = vmatpush1.msra.mxu0 %v510
    %535 = vmatprep.subr.mxu0 0.0
    %536 = vmatpush1.msra.mxu0 %v512
    %537 = vmatprep.subr.mxu0 0.0
    %538 = vmatpush1.msra.mxu0 0.0
    %539 = vmatprep.subr.mxu0 0.0
    %540 = vmatpush1.msra.mxu0 0.0
    %541 = vmatprep.subr.mxu0 0.0
    %542 = vmatpush1.msra.mxu0 0.0
    %543 = vmatprep.subr.mxu0 0.0
    %544 = vmatpush1.msra.mxu0 0.0
    %545 = vmatprep.subr.mxu0 0.0
    %546 = vmatpush1.msra.mxu0 0.0
    %547 = vmatprep.subr.mxu0 0.0
    %548 = vmatpush1.msra.mxu0 0.0
    %549 = vmatprep.subr.mxu0 0.0
    %550 = vmatpush1.msra.mxu0 0.0
    %551 = vmatprep.subr.mxu0 0.0
    %552 = vmatpush1.msra.mxu0 0.0
    %553 = vmatprep.subr.mxu0 0.0
    %554 = vmatpush1.msra.mxu0 0.0
    %555 = vmatprep.subr.mxu0 0.0
    %556 = vmatpush1.msra.mxu0 0.0
    %557 = vmatprep.subr.mxu0 0.0
    %558 = vmatpush1.msra.mxu0 0.0
    %559 = vmatprep.subr.mxu0 0.0
    %560 = vmatpush1.msra.mxu0 0.0
    %561 = vmatprep.subr.mxu0 0.0
    %562 = vmatpush1.msra.mxu0 0.0
    %563 = vmatprep.subr.mxu0 0.0
    %564 = vmatpush1.msra.mxu0 0.0
    %565 = vmatprep.subr.mxu0 0.0
    %566 = vmatpush1.msra.mxu0 0.0
    %567 = vmatprep.subr.mxu0 0.0
    %568 = vmatpush1.msra.mxu0 0.0
    %569 = vmatprep.subr.mxu0 0.0
    %570 = vmatpush1.msra.mxu0 0.0
    %571 = vmatprep.subr.mxu0 0.0
    %572 = vmatpush1.msra.mxu0 0.0
    %573 = vmatprep.subr.mxu0 0.0
    %574 = vmatpush1.msra.mxu0 0.0
    %575 = vmatprep.subr.mxu0 0.0
    %576 = vmatpush1.msra.mxu0 0.0
    %577 = vmatprep.subr.mxu0 0.0
    %578 = vmatpush1.msra.mxu0 0.0
    %579 = vmatprep.subr.mxu0 0.0
    %580 = vmatpush1.msra.mxu0 0.0
    %581 = vmatprep.subr.mxu0 0.0
    %582 = vmatpush1.msra.mxu0 0.0
    %583 = vmatprep.subr.mxu0 0.0
    %584 = vmatpush1.msra.mxu0 0.0
    %585 = vmatprep.subr.mxu0 0.0
    %586 = vmatpush1.msra.mxu0 0.0
    %587 = vmatprep.subr.mxu0 0.0
    %588 = vmatpush1.msra.mxu0 0.0
    %589 = vmatprep.subr.mxu0 0.0
    %590 = vmatpush1.msra.mxu0 0.0
    %591 = vmatprep.subr.mxu0 0.0
    %592 = vmatpush1.msra.mxu0 0.0
    %593 = vmatprep.mubr.f32.mxu0 0.0
    %594 = vmatmul.mubr.f32.gmra.mrb[0].mxu0 %v518
    %v595 = vpop.f32.mrb[0].mxu0
    %v596 = vadd.f32 0.0, %v595
    %v597 = vpop.f32.mrb[0].mxu0
    %598 = vmatprep.mubr.f32.mxu0 0.0
    %599 = vmatmul.mubr.f32.gmra.mrb[0].mxu0 %v521
    %v600 = vpop.f32.mrb[0].mxu0
    %v601 = vadd.f32 0.0, %v600
    %v602 = vpop.f32.mrb[0].mxu0
    %603 = vmatprep.mubr.f32.mxu0 0.0
    %604 = vmatmul.mubr.f32.gmra.mrb[0].mxu0 %v524
    %v605 = vpop.f32.mrb[0].mxu0
    %v606 = vadd.f32 0.0, %v605
    %v607 = vpop.f32.mrb[0].mxu0
    %608 = vmatprep.mubr.f32.mxu0 0.0
    %609 = vmatmul.mubr.f32.gmra.mrb[0].mxu0 %v527
    %v610 = vpop.f32.mrb[0].mxu0
    %v611 = vadd.f32 0.0, %v610
    %v612 = vpop.f32.mrb[0].mxu0
    %613 = vdwg.mxu0
    %v614 = vadd.f32 %v492, %v596
    %v615 = vadd.f32 %v493, %v601
    %v616 = vadd.f32 %v494, %v606
    %v617 = vadd.f32 %v495, %v611
    %v618 = vsel %vm87, %v614, 0.0
    %v619 = vsel %vm87, %v615, 0.0
    %v620 = vadd.f32 %v618, %v619
    %v621 = vsel %vm87, %v616, 0.0
    %v622 = vadd.f32 %v620, %v621
    %v623 = vsel %vm87, %v617, 0.0
    %v624 = vadd.f32 %v622, %v623
    %v625 = vrot.slane %v624, 4
    %v626 = vadd.f32 %v624, %v625
    %v627 = vrot.slane %v626, 2
    %v628 = vadd.f32 %v626, %v627
    %v629 = vrot.slane %v628, 1
    %v630 = vadd.f32 %v628, %v629
    %v631 = vmul.f32 %v630, %v327
    %v632 = vmul.f32 %v614, %v614
    %v633 = vmul.f32 %v615, %v615
    %v634 = vmul.f32 %v616, %v616
    %v635 = vmul.f32 %v617, %v617
    %v636 = vsel %vm87, %v632, 0.0
    %v637 = vsel %vm87, %v633, 0.0
    %v638 = vadd.f32 %v636, %v637
    %v639 = vsel %vm87, %v634, 0.0
    %v640 = vadd.f32 %v638, %v639
    %v641 = vsel %vm87, %v635, 0.0
    %v642 = vadd.f32 %v640, %v641
    %v643 = vrot.slane %v642, 4
    %v644 = vadd.f32 %v642, %v643
    %v645 = vrot.slane %v644, 2
    %v646 = vadd.f32 %v644, %v645
    %v647 = vrot.slane %v646, 1
    %v648 = vadd.f32 %v646, %v647
    %v649 = vmul.f32 %v648, %v327
    %v650 = vmul.f32 %v631, %v631
    %v651 = vsub.f32 %v649, %v650
    %v652 = vadd.f32 %v651, 1e-05
    %v653 = vrsqrt.pop %v652
    %v654 = vsub.f32 %v614, %v631
    %v655 = vsub.f32 %v615, %v631
    %v656 = vsub.f32 %v616, %v631
    %v657 = vsub.f32 %v617, %v631
    %v658 = vmul.f32 %v654, %v653
    %v659 = vmul.f32 %v655, %v653
    %v660 = vmul.f32 %v656, %v653
    %v661 = vmul.f32 %v657, %v653
    %s662 = scalar_lea.vmem %s4, 1
    %v663 = vld [vmem:[%s662] sm:$0x1]
    %v665 = vlaneseq
    %v666 = vshrl.u32 %v665, 7
    %v667 = vsub.s32 0, %v666
    %v668 = vrot.slane %v663, %v667
    %v670 = vmul.f32 %v658, %v668
    %v671 = vmul.f32 %v659, %v668
    %v672 = vmul.f32 %v660, %v668
    %v673 = vmul.f32 %v661, %v668
    %s674 = scalar_lea.vmem %s5, 1
    %v675 = vld [vmem:[%s674] sm:$0x1]
    %v677 = vlaneseq
    %v678 = vshrl.u32 %v677, 7
    %v679 = vsub.s32 0, %v678
    %v680 = vrot.slane %v675, %v679
    %v682 = vadd.f32 %v670, %v680
    %v683 = vadd.f32 %v671, %v680
    %v684 = vadd.f32 %v672, %v680
    %v685 = vadd.f32 %v673, %v680
    %v686 = vmax.f32 %v682, 0.0
    %v687 = vmax.f32 %v683, 0.0
    %v688 = vmax.f32 %v684, 0.0
    %v689 = vmax.f32 %v685, 0.0
    %s690 = scalar_lea.vmem [#allocation5], 64
    %v691 = vld [vmem:[%s690] sm:$0xff]
    %v692 = vld [vmem:[%s690 + $0x8] sm:$0xff]
    %v693 = vld [vmem:[%s690 + $0x10] sm:$0xff]
    %v694 = vld [vmem:[%s690 + $0x18] sm:$0xff]
    %v696 = vsel %vm87, %v686, 0
    %v699 = vsel %vm87, %v687, 0
    %v702 = vsel %vm87, %v688, 0
    %v705 = vsel %vm87, %v689, 0
    %707 = vmatprep.subr.mxu0 0.0
    %708 = vmatpush1.msra.mxu0 %v691
    %709 = vmatprep.subr.mxu0 0.0
    %710 = vmatpush1.msra.mxu0 %v692
    %711 = vmatprep.subr.mxu0 0.0
    %712 = vmatpush1.msra.mxu0 %v693
    %713 = vmatprep.subr.mxu0 0.0
    %714 = vmatpush1.msra.mxu0 %v694
    %715 = vmatprep.subr.mxu0 0.0
    %716 = vmatpush1.msra.mxu0 0.0
    %717 = vmatprep.subr.mxu0 0.0
    %718 = vmatpush1.msra.mxu0 0.0
    %719 = vmatprep.subr.mxu0 0.0
    %720 = vmatpush1.msra.mxu0 0.0
    %721 = vmatprep.subr.mxu0 0.0
    %722 = vmatpush1.msra.mxu0 0.0
    %723 = vmatprep.subr.mxu0 0.0
    %724 = vmatpush1.msra.mxu0 0.0
    %725 = vmatprep.subr.mxu0 0.0
    %726 = vmatpush1.msra.mxu0 0.0
    %727 = vmatprep.subr.mxu0 0.0
    %728 = vmatpush1.msra.mxu0 0.0
    %729 = vmatprep.subr.mxu0 0.0
    %730 = vmatpush1.msra.mxu0 0.0
    %731 = vmatprep.subr.mxu0 0.0
    %732 = vmatpush1.msra.mxu0 0.0
    %733 = vmatprep.subr.mxu0 0.0
    %734 = vmatpush1.msra.mxu0 0.0
    %735 = vmatprep.subr.mxu0 0.0
    %736 = vmatpush1.msra.mxu0 0.0
    %737 = vmatprep.subr.mxu0 0.0
    %738 = vmatpush1.msra.mxu0 0.0
    %739 = vmatprep.subr.mxu0 0.0
    %740 = vmatpush1.msra.mxu0 0.0
    %741 = vmatprep.subr.mxu0 0.0
    %742 = vmatpush1.msra.mxu0 0.0
    %743 = vmatprep.subr.mxu0 0.0
    %744 = vmatpush1.msra.mxu0 0.0
    %745 = vmatprep.subr.mxu0 0.0
    %746 = vmatpush1.msra.mxu0 0.0
    %747 = vmatprep.subr.mxu0 0.0
    %748 = vmatpush1.msra.mxu0 0.0
    %749 = vmatprep.subr.mxu0 0.0
    %750 = vmatpush1.msra.mxu0 0.0
    %751 = vmatprep.subr.mxu0 0.0
    %752 = vmatpush1.msra.mxu0 0.0
    %753 = vmatprep.subr.mxu0 0.0
    %754 = vmatpush1.msra.mxu0 0.0
    %755 = vmatprep.subr.mxu0 0.0
    %756 = vmatpush1.msra.mxu0 0.0
    %757 = vmatprep.subr.mxu0 0.0
    %758 = vmatpush1.msra.mxu0 0.0
    %759 = vmatprep.subr.mxu0 0.0
    %760 = vmatpush1.msra.mxu0 0.0
    %761 = vmatprep.subr.mxu0 0.0
    %762 = vmatpush1.msra.mxu0 0.0
    %763 = vmatprep.subr.mxu0 0.0
    %764 = vmatpush1.msra.mxu0 0.0
    %765 = vmatprep.subr.mxu0 0.0
    %766 = vmatpush1.msra.mxu0 0.0
    %767 = vmatprep.subr.mxu0 0.0
    %768 = vmatpush1.msra.mxu0 0.0
    %769 = vmatprep.subr.mxu0 0.0
    %770 = vmatpush1.msra.mxu0 0.0
    %771 = vmatprep.mubr.f32.mxu0 0.0
    %772 = vmatmul.mubr.f32.gmra.mrb[0].mxu0 %v696
    %v773 = vpop.f32.mrb[0].mxu0
    %v774 = vadd.f32 0.0, %v773
    %v775 = vpop.f32.mrb[0].mxu0
    %776 = vmatprep.mubr.f32.mxu0 0.0
    %777 = vmatmul.mubr.f32.gmra.mrb[0].mxu0 %v699
    %v778 = vpop.f32.mrb[0].mxu0
    %v779 = vadd.f32 0.0, %v778
    %v780 = vpop.f32.mrb[0].mxu0
    %781 = vmatprep.mubr.f32.mxu0 0.0
    %782 = vmatmul.mubr.f32.gmra.mrb[0].mxu0 %v702
    %v783 = vpop.f32.mrb[0].mxu0
    %v784 = vadd.f32 0.0, %v783
    %v785 = vpop.f32.mrb[0].mxu0
    %786 = vmatprep.mubr.f32.mxu0 0.0
    %787 = vmatmul.mubr.f32.gmra.mrb[0].mxu0 %v705
    %v788 = vpop.f32.mrb[0].mxu0
    %v789 = vadd.f32 0.0, %v788
    %v790 = vpop.f32.mrb[0].mxu0
    %791 = vdwg.mxu0
    %s792 = scalar_lea.vmem [#allocation7], 64
    %v793 = vld [vmem:[%s792] sm:$0xff]
    %v794 = vld [vmem:[%s792 + $0x8] sm:$0xff]
    %v795 = vld [vmem:[%s792 + $0x10] sm:$0xff]
    %v796 = vld [vmem:[%s792 + $0x18] sm:$0xff]
    %v797 = vmul.f32 %v793, %v774
    %v798 = vmul.f32 %v794, %v779
    %v799 = vmul.f32 %v795, %v784
    %v800 = vmul.f32 %v796, %v789
    %s801 = scalar_lea.vmem [#allocation8], 64
    %v802 = vld [vmem:[%s801] sm:$0xff]
    %v803 = vld [vmem:[%s801 + $0x8] sm:$0xff]
    %v804 = vld [vmem:[%s801 + $0x10] sm:$0xff]
    %v805 = vld [vmem:[%s801 + $0x18] sm:$0xff]
    %810 = vrot.lane.b32.xlu0 %v774, 96
    %v811 = vpop.permute.xlu0 %810
    %812 = vrot.lane.b32.xlu0 %v779, 96
    %v813 = vpop.permute.xlu0 %812
    %814 = vrot.lane.b32.xlu0 %v784, 96
    %v815 = vpop.permute.xlu0 %814
    %816 = vrot.lane.b32.xlu0 %v789, 96
    %v817 = vpop.permute.xlu0 %816
    %v823 = vsel %vm87, %v802, 0
    %v826 = vsel %vm87, %v803, 0
    %v829 = vsel %vm87, %v804, 0
    %v832 = vsel %vm87, %v805, 0
    %834 = vmatprep.subr.mxu0 0.0
    %835 = vmatpush1.msra.mxu0 %v811
    %836 = vmatprep.subr.mxu0 0.0
    %837 = vmatpush1.msra.mxu0 %v813
    %838 = vmatprep.subr.mxu0 0.0
    %839 = vmatpush1.msra.mxu0 %v815
    %840 = vmatprep.subr.mxu0 0.0
    %841 = vmatpush1.msra.mxu0 %v817
    %842 = vmatprep.subr.mxu0 0.0
    %843 = vmatpush1.msra.mxu0 0.0
    %844 = vmatprep.subr.mxu0 0.0
    %845 = vmatpush1.msra.mxu0 0.0
    %846 = vmatprep.subr.mxu0 0.0
    %847 = vmatpush1.msra.mxu0 0.0
    %848 = vmatprep.subr.mxu0 0.0
    %849 = vmatpush1.msra.mxu0 0.0
    %850 = vmatprep.subr.mxu0 0.0
    %851 = vmatpush1.msra.mxu0 0.0
    %852 = vmatprep.subr.mxu0 0.0
    %853 = vmatpush1.msra.mxu0 0.0
    %854 = vmatprep.subr.mxu0 0.0
    %855 = vmatpush1.msra.mxu0 0.0
    %856 = vmatprep.subr.mxu0 0.0
    %857 = vmatpush1.msra.mxu0 0.0
    %858 = vmatprep.subr.mxu0 0.0
    %859 = vmatpush1.msra.mxu0 0.0
    %860 = vmatprep.subr.mxu0 0.0
    %861 = vmatpush1.msra.mxu0 0.0
    %862 = vmatprep.subr.mxu0 0.0
    %863 = vmatpush1.msra.mxu0 0.0
    %864 = vmatprep.subr.mxu0 0.0
    %865 = vmatpush1.msra.mxu0 0.0
    %866 = vmatprep.subr.mxu0 0.0
    %867 = vmatpush1.msra.mxu0 0.0
    %868 = vmatprep.subr.mxu0 0.0
    %869 = vmatpush1.msra.mxu0 0.0
    %870 = vmatprep.subr.mxu0 0.0
    %871 = vmatpush1.msra.mxu0 0.0
    %872 = vmatprep.subr.mxu0 0.0
    %873 = vmatpush1.msra.mxu0 0.0
    %874 = vmatprep.subr.mxu0 0.0
    %875 = vmatpush1.msra.mxu0 0.0
    %876 = vmatprep.subr.mxu0 0.0
    %877 = vmatpush1.msra.mxu0 0.0
    %878 = vmatprep.subr.mxu0 0.0
    %879 = vmatpush1.msra.mxu0 0.0
    %880 = vmatprep.subr.mxu0 0.0
    %881 = vmatpush1.msra.mxu0 0.0
    %882 = vmatprep.subr.mxu0 0.0
    %883 = vmatpush1.msra.mxu0 0.0
    %884 = vmatprep.subr.mxu0 0.0
    %885 = vmatpush1.msra.mxu0 0.0
    %886 = vmatprep.subr.mxu0 0.0
    %887 = vmatpush1.msra.mxu0 0.0
    %888 = vmatprep.subr.mxu0 0.0
    %889 = vmatpush1.msra.mxu0 0.0
    %890 = vmatprep.subr.mxu0 0.0
    %891 = vmatpush1.msra.mxu0 0.0
    %892 = vmatprep.subr.mxu0 0.0
    %893 = vmatpush1.msra.mxu0 0.0
    %894 = vmatprep.subr.mxu0 0.0
    %895 = vmatpush1.msra.mxu0 0.0
    %896 = vmatprep.subr.mxu0 0.0
    %897 = vmatpush1.msra.mxu0 0.0
    %898 = vmatprep.mubr.f32.mxu0 0.0
    %899 = vmatmul.mubr.f32.gmra.mrb[0].mxu0 %v823
    %v900 = vpop.f32.mrb[0].mxu0
    %v901 = vadd.f32 0.0, %v900
    %v902 = vpop.f32.mrb[0].mxu0
    %903 = vmatprep.mubr.f32.mxu0 0.0
    %904 = vmatmul.mubr.f32.gmra.mrb[0].mxu0 %v826
    %v905 = vpop.f32.mrb[0].mxu0
    %v906 = vadd.f32 0.0, %v905
    %v907 = vpop.f32.mrb[0].mxu0
    %908 = vmatprep.mubr.f32.mxu0 0.0
    %909 = vmatmul.mubr.f32.gmra.mrb[0].mxu0 %v829
    %v910 = vpop.f32.mrb[0].mxu0
    %v911 = vadd.f32 0.0, %v910
    %v912 = vpop.f32.mrb[0].mxu0
    %913 = vmatprep.mubr.f32.mxu0 0.0
    %914 = vmatmul.mubr.f32.gmra.mrb[0].mxu0 %v832
    %v915 = vpop.f32.mrb[0].mxu0
    %v916 = vadd.f32 0.0, %v915
    %v917 = vpop.f32.mrb[0].mxu0
    %918 = vdwg.mxu0
    %v919 = vadd.f32 %v797, %v901
    %v920 = vadd.f32 %v798, %v906
    %v921 = vadd.f32 %v799, %v911
    %v922 = vadd.f32 %v800, %v916
    %v923 = vsel %vm87, %v919, 0.0
    %v924 = vsel %vm87, %v920, 0.0
    %v925 = vadd.f32 %v923, %v924
    %v926 = vsel %vm87, %v921, 0.0
    %v927 = vadd.f32 %v925, %v926
    %v928 = vsel %vm87, %v922, 0.0
    %v929 = vadd.f32 %v927, %v928
    %v930 = vrot.slane %v929, 4
    %v931 = vadd.f32 %v929, %v930
    %v932 = vrot.slane %v931, 2
    %v933 = vadd.f32 %v931, %v932
    %v934 = vrot.slane %v933, 1
    %v935 = vadd.f32 %v933, %v934
    %v936 = vmul.f32 %v935, %v327
    %v937 = vmul.f32 %v919, %v919
    %v938 = vmul.f32 %v920, %v920
    %v939 = vmul.f32 %v921, %v921
    %v940 = vmul.f32 %v922, %v922
    %v941 = vsel %vm87, %v937, 0.0
    %v942 = vsel %vm87, %v938, 0.0
    %v943 = vadd.f32 %v941, %v942
    %v944 = vsel %vm87, %v939, 0.0
    %v945 = vadd.f32 %v943, %v944
    %v946 = vsel %vm87, %v940, 0.0
    %v947 = vadd.f32 %v945, %v946
    %v948 = vrot.slane %v947, 4
    %v949 = vadd.f32 %v947, %v948
    %v950 = vrot.slane %v949, 2
    %v951 = vadd.f32 %v949, %v950
    %v952 = vrot.slane %v951, 1
    %v953 = vadd.f32 %v951, %v952
    %v954 = vmul.f32 %v953, %v327
    %v955 = vmul.f32 %v936, %v936
    %v956 = vsub.f32 %v954, %v955
    %v957 = vadd.f32 %v956, 1e-05
    %v958 = vrsqrt.pop %v957
    %v959 = vsub.f32 %v919, %v936
    %v960 = vsub.f32 %v920, %v936
    %v961 = vsub.f32 %v921, %v936
    %v962 = vsub.f32 %v922, %v936
    %v963 = vmul.f32 %v959, %v958
    %v964 = vmul.f32 %v960, %v958
    %v965 = vmul.f32 %v961, %v958
    %v966 = vmul.f32 %v962, %v958
    %s967 = scalar_lea.vmem %s4, 2
    %v968 = vld [vmem:[%s967] sm:$0x1]
    %v970 = vlaneseq
    %v971 = vshrl.u32 %v970, 7
    %v972 = vsub.s32 0, %v971
    %v973 = vrot.slane %v968, %v972
    %v975 = vmul.f32 %v963, %v973
    %v976 = vmul.f32 %v964, %v973
    %v977 = vmul.f32 %v965, %v973
    %v978 = vmul.f32 %v966, %v973
    %s979 = scalar_lea.vmem %s5, 2
    %v980 = vld [vmem:[%s979] sm:$0x1]
    %v982 = vlaneseq
    %v983 = vshrl.u32 %v982, 7
    %v984 = vsub.s32 0, %v983
    %v985 = vrot.slane %v980, %v984
    %v987 = vadd.f32 %v975, %v985
    %v988 = vadd.f32 %v976, %v985
    %v989 = vadd.f32 %v977, %v985
    %v990 = vadd.f32 %v978, %v985
    %v991 = vmax.f32 %v987, 0.0
    %v992 = vmax.f32 %v988, 0.0
    %v993 = vmax.f32 %v989, 0.0
    %v994 = vmax.f32 %v990, 0.0
    %s995 = scalar_lea.vmem [#allocation5], 96
    %v996 = vld [vmem:[%s995] sm:$0xff]
    %v997 = vld [vmem:[%s995 + $0x8] sm:$0xff]
    %v998 = vld [vmem:[%s995 + $0x10] sm:$0xff]
    %v999 = vld [vmem:[%s995 + $0x18] sm:$0xff]
    %v1001 = vsel %vm87, %v991, 0
    %v1004 = vsel %vm87, %v992, 0
    %v1007 = vsel %vm87, %v993, 0
    %v1010 = vsel %vm87, %v994, 0
    %1012 = vmatprep.subr.mxu0 0.0
    %1013 = vmatpush1.msra.mxu0 %v996
    %1014 = vmatprep.subr.mxu0 0.0
    %1015 = vmatpush1.msra.mxu0 %v997
    %1016 = vmatprep.subr.mxu0 0.0
    %1017 = vmatpush1.msra.mxu0 %v998
    %1018 = vmatprep.subr.mxu0 0.0
    %1019 = vmatpush1.msra.mxu0 %v999
    %1020 = vmatprep.subr.mxu0 0.0
    %1021 = vmatpush1.msra.mxu0 0.0
    %1022 = vmatprep.subr.mxu0 0.0
    %1023 = vmatpush1.msra.mxu0 0.0
    %1024 = vmatprep.subr.mxu0 0.0
    %1025 = vmatpush1.msra.mxu0 0.0
    %1026 = vmatprep.subr.mxu0 0.0
    %1027 = vmatpush1.msra.mxu0 0.0
    %1028 = vmatprep.subr.mxu0 0.0
    %1029 = vmatpush1.msra.mxu0 0.0
    %1030 = vmatprep.subr.mxu0 0.0
    %1031 = vmatpush1.msra.mxu0 0.0
    %1032 = vmatprep.subr.mxu0 0.0
    %1033 = vmatpush1.msra.mxu0 0.0
    %1034 = vmatprep.subr.mxu0 0.0
    %1035 = vmatpush1.msra.mxu0 0.0
    %1036 = vmatprep.subr.mxu0 0.0
    %1037 = vmatpush1.msra.mxu0 0.0
    %1038 = vmatprep.subr.mxu0 0.0
    %1039 = vmatpush1.msra.mxu0 0.0
    %1040 = vmatprep.subr.mxu0 0.0
    %1041 = vmatpush1.msra.mxu0 0.0
    %1042 = vmatprep.subr.mxu0 0.0
    %1043 = vmatpush1.msra.mxu0 0.0
    %1044 = vmatprep.subr.mxu0 0.0
    %1045 = vmatpush1.msra.mxu0 0.0
    %1046 = vmatprep.subr.mxu0 0.0
    %1047 = vmatpush1.msra.mxu0 0.0
    %1048 = vmatprep.subr.mxu0 0.0
    %1049 = vmatpush1.msra.mxu0 0.0
    %1050 = vmatprep.subr.mxu0 0.0
    %1051 = vmatpush1.msra.mxu0 0.0
    %1052 = vmatprep.subr.mxu0 0.0
    %1053 = vmatpush1.msra.mxu0 0.0
    %1054 = vmatprep.subr.mxu0 0.0
    %1055 = vmatpush1.msra.mxu0 0.0
    %1056 = vmatprep.subr.mxu0 0.0
    %1057 = vmatpush1.msra.mxu0 0.0
    %1058 = vmatprep.subr.mxu0 0.0
    %1059 = vmatpush1.msra.mxu0 0.0
    %1060 = vmatprep.subr.mxu0 0.0
    %1061 = vmatpush1.msra.mxu0 0.0
    %1062 = vmatprep.subr.mxu0 0.0
    %1063 = vmatpush1.msra.mxu0 0.0
    %1064 = vmatprep.subr.mxu0 0.0
    %1065 = vmatpush1.msra.mxu0 0.0
    %1066 = vmatprep.subr.mxu0 0.0
    %1067 = vmatpush1.msra.mxu0 0.0
    %1068 = vmatprep.subr.mxu0 0.0
    %1069 = vmatpush1.msra.mxu0 0.0
    %1070 = vmatprep.subr.mxu0 0.0
    %1071 = vmatpush1.msra.mxu0 0.0
    %1072 = vmatprep.subr.mxu0 0.0
    %1073 = vmatpush1.msra.mxu0 0.0
    %1074 = vmatprep.subr.mxu0 0.0
    %1075 = vmatpush1.msra.mxu0 0.0
    %1076 = vmatprep.mubr.f32.mxu0 0.0
    %1077 = vmatmul.mubr.f32.gmra.mrb[0].mxu0 %v1001
    %v1078 = vpop.f32.mrb[0].mxu0
    %v1079 = vadd.f32 0.0, %v1078
    %v1080 = vpop.f32.mrb[0].mxu0
    %1081 = vmatprep.mubr.f32.mxu0 0.0
    %1082 = vmatmul.mubr.f32.gmra.mrb[0].mxu0 %v1004
    %v1083 = vpop.f32.mrb[0].mxu0
    %v1084 = vadd.f32 0.0, %v1083
    %v1085 = vpop.f32.mrb[0].mxu0
    %1086 = vmatprep.mubr.f32.mxu0 0.0
    %1087 = vmatmul.mubr.f32.gmra.mrb[0].mxu0 %v1007
    %v1088 = vpop.f32.mrb[0].mxu0
    %v1089 = vadd.f32 0.0, %v1088
    %v1090 = vpop.f32.mrb[0].mxu0
    %1091 = vmatprep.mubr.f32.mxu0 0.0
    %1092 = vmatmul.mubr.f32.gmra.mrb[0].mxu0 %v1010
    %v1093 = vpop.f32.mrb[0].mxu0
    %v1094 = vadd.f32 0.0, %v1093
    %v1095 = vpop.f32.mrb[0].mxu0
    %1096 = vdwg.mxu0
    %s1097 = scalar_lea.vmem [#allocation7], 96
    %v1098 = vld [vmem:[%s1097] sm:$0xff]
    %v1099 = vld [vmem:[%s1097 + $0x8] sm:$0xff]
    %v1100 = vld [vmem:[%s1097 + $0x10] sm:$0xff]
    %v1101 = vld [vmem:[%s1097 + $0x18] sm:$0xff]
    %v1102 = vmul.f32 %v1098, %v1079
    %v1103 = vmul.f32 %v1099, %v1084
    %v1104 = vmul.f32 %v1100, %v1089
    %v1105 = vmul.f32 %v1101, %v1094
    %s1106 = scalar_lea.vmem [#allocation8], 96
    %v1107 = vld [vmem:[%s1106] sm:$0xff]
    %v1108 = vld [vmem:[%s1106 + $0x8] sm:$0xff]
    %v1109 = vld [vmem:[%s1106 + $0x10] sm:$0xff]
    %v1110 = vld [vmem:[%s1106 + $0x18] sm:$0xff]
    %1115 = vrot.lane.b32.xlu0 %v1079, 96
    %v1116 = vpop.permute.xlu0 %1115
    %1117 = vrot.lane.b32.xlu0 %v1084, 96
    %v1118 = vpop.permute.xlu0 %1117
    %1119 = vrot.lane.b32.xlu0 %v1089, 96
    %v1120 = vpop.permute.xlu0 %1119
    %1121 = vrot.lane.b32.xlu0 %v1094, 96
    %v1122 = vpop.permute.xlu0 %1121
    %v1128 = vsel %vm87, %v1107, 0
    %v1131 = vsel %vm87, %v1108, 0
    %v1134 = vsel %vm87, %v1109, 0
    %v1137 = vsel %vm87, %v1110, 0
    %1139 = vmatprep.subr.mxu0 0.0
    %1140 = vmatpush1.msra.mxu0 %v1116
    %1141 = vmatprep.subr.mxu0 0.0
    %1142 = vmatpush1.msra.mxu0 %v1118
    %1143 = vmatprep.subr.mxu0 0.0
    %1144 = vmatpush1.msra.mxu0 %v1120
    %1145 = vmatprep.subr.mxu0 0.0
    %1146 = vmatpush1.msra.mxu0 %v1122
    %1147 = vmatprep.subr.mxu0 0.0
    %1148 = vmatpush1.msra.mxu0 0.0
    %1149 = vmatprep.subr.mxu0 0.0
    %1150 = vmatpush1.msra.mxu0 0.0
    %1151 = vmatprep.subr.mxu0 0.0
    %1152 = vmatpush1.msra.mxu0 0.0
    %1153 = vmatprep.subr.mxu0 0.0
    %1154 = vmatpush1.msra.mxu0 0.0
    %1155 = vmatprep.subr.mxu0 0.0
    %1156 = vmatpush1.msra.mxu0 0.0
    %1157 = vmatprep.subr.mxu0 0.0
    %1158 = vmatpush1.msra.mxu0 0.0
    %1159 = vmatprep.subr.mxu0 0.0
    %1160 = vmatpush1.msra.mxu0 0.0
    %1161 = vmatprep.subr.mxu0 0.0
    %1162 = vmatpush1.msra.mxu0 0.0
    %1163 = vmatprep.subr.mxu0 0.0
    %1164 = vmatpush1.msra.mxu0 0.0
    %1165 = vmatprep.subr.mxu0 0.0
    %1166 = vmatpush1.msra.mxu0 0.0
    %1167 = vmatprep.subr.mxu0 0.0
    %1168 = vmatpush1.msra.mxu0 0.0
    %1169 = vmatprep.subr.mxu0 0.0
    %1170 = vmatpush1.msra.mxu0 0.0
    %1171 = vmatprep.subr.mxu0 0.0
    %1172 = vmatpush1.msra.mxu0 0.0
    %1173 = vmatprep.subr.mxu0 0.0
    %1174 = vmatpush1.msra.mxu0 0.0
    %1175 = vmatprep.subr.mxu0 0.0
    %1176 = vmatpush1.msra.mxu0 0.0
    %1177 = vmatprep.subr.mxu0 0.0
    %1178 = vmatpush1.msra.mxu0 0.0
    %1179 = vmatprep.subr.mxu0 0.0
    %1180 = vmatpush1.msra.mxu0 0.0
    %1181 = vmatprep.subr.mxu0 0.0
    %1182 = vmatpush1.msra.mxu0 0.0
    %1183 = vmatprep.subr.mxu0 0.0
    %1184 = vmatpush1.msra.mxu0 0.0
    %1185 = vmatprep.subr.mxu0 0.0
    %1186 = vmatpush1.msra.mxu0 0.0
    %1187 = vmatprep.subr.mxu0 0.0
    %1188 = vmatpush1.msra.mxu0 0.0
    %1189 = vmatprep.subr.mxu0 0.0
    %1190 = vmatpush1.msra.mxu0 0.0
    %1191 = vmatprep.subr.mxu0 0.0
    %1192 = vmatpush1.msra.mxu0 0.0
    %1193 = vmatprep.subr.mxu0 0.0
    %1194 = vmatpush1.msra.mxu0 0.0
    %1195 = vmatprep.subr.mxu0 0.0
    %1196 = vmatpush1.msra.mxu0 0.0
    %1197 = vmatprep.subr.mxu0 0.0
    %1198 = vmatpush1.msra.mxu0 0.0
    %1199 = vmatprep.subr.mxu0 0.0
    %1200 = vmatpush1.msra.mxu0 0.0
    %1201 = vmatprep.subr.mxu0 0.0
    %1202 = vmatpush1.msra.mxu0 0.0
    %1203 = vmatprep.mubr.f32.mxu0 0.0
    %1204 = vmatmul.mubr.f32.gmra.mrb[0].mxu0 %v1128
    %v1205 = vpop.f32.mrb[0].mxu0
    %v1206 = vadd.f32 0.0, %v1205
    %v1207 = vpop.f32.mrb[0].mxu0
    %1208 = vmatprep.mubr.f32.mxu0 0.0
    %1209 = vmatmul.mubr.f32.gmra.mrb[0].mxu0 %v1131
    %v1210 = vpop.f32.mrb[0].mxu0
    %v1211 = vadd.f32 0.0, %v1210
    %v1212 = vpop.f32.mrb[0].mxu0
    %1213 = vmatprep.mubr.f32.mxu0 0.0
    %1214 = vmatmul.mubr.f32.gmra.mrb[0].mxu0 %v1134
    %v1215 = vpop.f32.mrb[0].mxu0
    %v1216 = vadd.f32 0.0, %v1215
    %v1217 = vpop.f32.mrb[0].mxu0
    %1218 = vmatprep.mubr.f32.mxu0 0.0
    %1219 = vmatmul.mubr.f32.gmra.mrb[0].mxu0 %v1137
    %v1220 = vpop.f32.mrb[0].mxu0
    %v1221 = vadd.f32 0.0, %v1220
    %v1222 = vpop.f32.mrb[0].mxu0
    %1223 = vdwg.mxu0
    %v1224 = vadd.f32 %v1102, %v1206
    %v1225 = vadd.f32 %v1103, %v1211
    %v1226 = vadd.f32 %v1104, %v1216
    %v1227 = vadd.f32 %v1105, %v1221
    %v1228 = vsel %vm87, %v1224, 0.0
    %v1229 = vsel %vm87, %v1225, 0.0
    %v1230 = vadd.f32 %v1228, %v1229
    %v1231 = vsel %vm87, %v1226, 0.0
    %v1232 = vadd.f32 %v1230, %v1231
    %v1233 = vsel %vm87, %v1227, 0.0
    %v1234 = vadd.f32 %v1232, %v1233
    %v1235 = vrot.slane %v1234, 4
    %v1236 = vadd.f32 %v1234, %v1235
    %v1237 = vrot.slane %v1236, 2
    %v1238 = vadd.f32 %v1236, %v1237
    %v1239 = vrot.slane %v1238, 1
    %v1240 = vadd.f32 %v1238, %v1239
    %v1241 = vmul.f32 %v1240, %v327
    %v1242 = vmul.f32 %v1224, %v1224
    %v1243 = vmul.f32 %v1225, %v1225
    %v1244 = vmul.f32 %v1226, %v1226
    %v1245 = vmul.f32 %v1227, %v1227
    %v1246 = vsel %vm87, %v1242, 0.0
    %v1247 = vsel %vm87, %v1243, 0.0
    %v1248 = vadd.f32 %v1246, %v1247
    %v1249 = vsel %vm87, %v1244, 0.0
    %v1250 = vadd.f32 %v1248, %v1249
    %v1251 = vsel %vm87, %v1245, 0.0
    %v1252 = vadd.f32 %v1250, %v1251
    %v1253 = vrot.slane %v1252, 4
    %v1254 = vadd.f32 %v1252, %v1253
    %v1255 = vrot.slane %v1254, 2
    %v1256 = vadd.f32 %v1254, %v1255
    %v1257 = vrot.slane %v1256, 1
    %v1258 = vadd.f32 %v1256, %v1257
    %v1259 = vmul.f32 %v1258, %v327
    %v1260 = vmul.f32 %v1241, %v1241
    %v1261 = vsub.f32 %v1259, %v1260
    %v1262 = vadd.f32 %v1261, 1e-05
    %v1263 = vrsqrt.pop %v1262
    %v1264 = vsub.f32 %v1224, %v1241
    %v1265 = vsub.f32 %v1225, %v1241
    %v1266 = vsub.f32 %v1226, %v1241
    %v1267 = vsub.f32 %v1227, %v1241
    %v1268 = vmul.f32 %v1264, %v1263
    %v1269 = vmul.f32 %v1265, %v1263
    %v1270 = vmul.f32 %v1266, %v1263
    %v1271 = vmul.f32 %v1267, %v1263
    %s1272 = scalar_lea.vmem %s4, 3
    %v1273 = vld [vmem:[%s1272] sm:$0x1]
    %v1275 = vlaneseq
    %v1276 = vshrl.u32 %v1275, 7
    %v1277 = vsub.s32 0, %v1276
    %v1278 = vrot.slane %v1273, %v1277
    %v1280 = vmul.f32 %v1268, %v1278
    %v1281 = vmul.f32 %v1269, %v1278
    %v1282 = vmul.f32 %v1270, %v1278
    %v1283 = vmul.f32 %v1271, %v1278
    %s1284 = scalar_lea.vmem %s5, 3
    %v1285 = vld [vmem:[%s1284] sm:$0x1]
    %v1287 = vlaneseq
    %v1288 = vshrl.u32 %v1287, 7
    %v1289 = vsub.s32 0, %v1288
    %v1290 = vrot.slane %v1285, %v1289
    %v1292 = vadd.f32 %v1280, %v1290
    %v1293 = vadd.f32 %v1281, %v1290
    %v1294 = vadd.f32 %v1282, %v1290
    %v1295 = vadd.f32 %v1283, %v1290
    %v1296 = vmax.f32 %v1292, 0.0
    %v1297 = vmax.f32 %v1293, 0.0
    %v1298 = vmax.f32 %v1294, 0.0
    %v1299 = vmax.f32 %v1295, 0.0
    %1300 = vst.msk [vmem:[#allocation10] sm:$0xff] %vm87, %v1296
    %1301 = vst.msk [vmem:[#allocation10 + $0x8] sm:$0xff] %vm87, %v1297
    %1302 = vst.msk [vmem:[#allocation10 + $0x10] sm:$0xff] %vm87, %v1298
    %1303 = vst.msk [vmem:[#allocation10 + $0x18] sm:$0xff] %vm87, %v1299
    // Predicated region
    $region42: #{simple_sem_gcn.1} parent=1 // pred_check
      _
    $region43: #{simple_sem_gcn.1} parent=1 // pred_check_branch
      %1305 = sbr.rel (0) target = $region45
    $region44: #{simple_sem_gcn.1} parent=1 // pred_region
      %s1307 = ssub.s32 512, 512
      %1308 = vsyncadd [#allocation4], %s1307
      %s1309 = sshll.u32 [#allocation10], 4
      %s1310 = int_to_ptr.vmem [resolvable:$true] %s1309
      %1315 = dma.vmem_to_hbm [thread:$0]  %s1310, 512, %s6, [#allocation4], 128, 128, 8
    $region45: #{simple_sem_gcn.1} parent=1 // pred_fallthru
      _
    // Predicated region
    $region46: #{simple_sem_gcn.1} parent=1 // pred_check
      _
    $region47: #{simple_sem_gcn.1} parent=1 // pred_check_branch
      %1317 = sbr.rel (0) target = $region49
    $region48: #{simple_sem_gcn.1} parent=1 // pred_region
      %1318 = dma.done [#allocation4], 512
    $region49: #{simple_sem_gcn.1} parent=1 // pred_fallthru
      _
    %1319 = vsyncpa [#allocation3], 1
    %1320 = vsyncpa [#allocation6], 1
    %1321 = vsyncpa [#allocation9], 1
    %1322 = vsyncpa [#allocation4], 1

</llo_original>
